<compile_context>
chip_gen: v7x
topology: tpu7x:2x2x1
jax: 0.10.0
libtpu: 0.0.40
codegen_flags: <defaults>
</compile_context>

<pallas_src>
import functools

import jax
import jax.numpy as jnp
from jax.experimental import pallas as pl
from jax.experimental.pallas import tpu as pltpu


def _round_up(n, m):
    return (n + m - 1) // m * m


def dnnltr_kernel(x_ref, wsum_ref, wg_ref, bl_ref, bg_ref, o_ref, *, K):
    # x_ref    : (TB, L)    input rows (compute dtype)
    # wsum_ref : (L, C)     precomputed local-branch weight (compute dtype)
    # wg_ref   : (C, K)     conv_global weight, channel-major (compute dtype)
    # bl_ref   : (1, C)     L_out * b_local, f32
    # bg_ref   : (1, C)     b_global, f32
    # o_ref    : (1, 1, TB) lane-dense per-tile output row, f32
    TB, L = x_ref.shape
    C = wsum_ref.shape[1]
    L_out = L - K + 1

    x = x_ref[...]                                          # (TB, L)

    # ---- local branch: one MXU matmul, contraction depth L (not K).
    s_local = jnp.dot(x, wsum_ref[...],
                      preferred_element_type=jnp.float32)   # (TB, C) f32
    s_local = s_local + bl_ref[...]                         # += L_out * bl

    # ---- global branch: in-kernel im2col with time on the lane axis.
    cols = [x[:, k:k + L_out] for k in range(K)]            # K x (TB, L_out)
    patches = jnp.stack(cols, axis=1)                       # (TB, K, L_out)
    wg_b = jnp.broadcast_to(wg_ref[...][None, :, :], (TB, C, K))
    glob = jnp.einsum('bck,bkt->bct', wg_b, patches,
                      preferred_element_type=jnp.float32)   # (TB, C, L_out) f32
    # conv_global bias is t-invariant: add it after the temporal (lane) max.
    g = jnp.max(glob, axis=-1) + bg_ref[...]                # (TB, C) f32

    # ---- epilogue: channel reduction, lane-dense (1, 1, TB) store.
    out = jnp.sum(g * s_local, axis=1)                      # (TB,)
    o_ref[...] = out[None, None, :].astype(o_ref.dtype)


def dnnltr_forward(feats, w_local, b_local, w_global, b_global,
                   *, compute_dtype=jnp.bfloat16):
    """feats: (B, 1, L) NCW like the PyTorch module. Returns (B,) float32."""
    B, c_in, L = feats.shape
    assert c_in == 1
    C, _, K = w_local.shape
    L_out = L - K + 1
    assert L_out >= 1, "sequence length must be >= kernel size"

    itemsize = jnp.dtype(compute_dtype).itemsize

    # ---- wrapper-side weight prep (tiny, plain JAX) -----------------------
    # W_sum[i, c] = sum_{k : 0 <= i-k < L_out} wl[k, c]   (local-branch collapse)
    wlT = jnp.transpose(w_local[:, 0, :]).astype(jnp.float32)   # (K, C)
    i_idx = jnp.arange(L)[:, None]                              # (L, 1)
    k_idx = jnp.arange(K)[None, :]                              # (1, K)
    t_idx = i_idx - k_idx
    sel = ((t_idx >= 0) & (t_idx < L_out)).astype(jnp.float32)  # (L, K)
    w_sum = (sel @ wlT).astype(compute_dtype)                   # (L, C)

    wg_ck = w_global[:, 0, :].astype(compute_dtype)             # (C, K)
    bl_scaled = (jnp.float32(L_out) * b_local).reshape(1, C).astype(jnp.float32)
    bg2 = b_global.reshape(1, C).astype(jnp.float32)

    # ---- batch-tile selection: VMEM estimate + >=2 grid steps on megacore --
    lo128 = _round_up(L_out, 128)
    l128 = _round_up(L, 128)
    c_sub = _round_up(C, 8)
    c_lane = max(_round_up(C, 128), 128)
    per_b = (c_sub * lo128 * 4                     # glob (f32, dominant)
             + _round_up(K, 8) * lo128 * itemsize  # patches
             + c_sub * 128 * itemsize              # broadcast conv_global weight
             + l128 * itemsize                     # x row
             + 4 * c_lane * 4)                     # s_local / g / epilogue temps
    budget = 6 * 1024 * 1024

    tb_budget = 8
    for cand in (128, 64, 32, 16, 8):
        if cand * per_b <= budget:
            tb_budget = cand
            break

    B8 = _round_up(B, 8)
    if B8 >= 16:
        cap = max(8, (B8 // 2) // 8 * 8)   # keep >= 2 grid steps for v7x's 2 TCs
    else:
        cap = B8
    TB = max(8, min(tb_budget, cap))
    B_pad = _round_up(B, TB)
    nb = B_pad // TB

    # VMEM limit with headroom for double-buffered inputs.
    fixed = (2 * TB * l128 * itemsize              # x blocks (double-buffered)
             + 2 * _round_up(L, 8) * c_lane * itemsize   # W_sum
             + 2 * c_sub * 128 * itemsize          # wg
             + 8 * c_lane * 4)                     # biases
    need = TB * per_b + fixed
    vmem_limit = int(min(max(32 * 1024 * 1024, 2 * need), 96 * 1024 * 1024))

    # ---- glue: layout only (no HBM im2col, no gather) ----------------------
    xs = feats[:, 0, :]                                          # (B, L)
    xs = jnp.pad(xs, ((0, B_pad - B), (0, 0))).astype(compute_dtype)

    kernel = functools.partial(dnnltr_kernel, K=K)

    out = pl.pallas_call(
        kernel,
        grid=(nb,),
        out_shape=jax.ShapeDtypeStruct((nb, 1, TB), jnp.float32),
        in_specs=[
            pl.BlockSpec((TB, L), lambda i: (i, 0)),   # x tile per batch block
            pl.BlockSpec((L, C), lambda i: (0, 0)),    # W_sum (VMEM resident)
            pl.BlockSpec((C, K), lambda i: (0, 0)),    # wg   (VMEM resident)
            pl.BlockSpec((1, C), lambda i: (0, 0)),    # L_out * bl
            pl.BlockSpec((1, C), lambda i: (0, 0)),    # bg
        ],
        out_specs=pl.BlockSpec((1, 1, TB), lambda i: (i, 0, 0)),
        compiler_params=pltpu.CompilerParams(
            dimension_semantics=("parallel",),
            vmem_limit_bytes=vmem_limit),
    )(xs, w_sum, wg_ck, bl_scaled, bg2)

    return out.reshape(B_pad)[:B]


def dnnltr_reference(feats, w_local, b_local, w_global, b_global):
    """Pure-JAX reference matching the PyTorch forward exactly."""
    dn = jax.lax.conv_dimension_numbers(feats.shape, w_local.shape,
                                        ('NCH', 'OIH', 'NCH'))
    local = jax.lax.conv_general_dilated(feats, w_local, (1,), 'VALID',
                                         dimension_numbers=dn) + b_local[None, :, None]
    glob = jax.lax.conv_general_dilated(feats, w_global, (1,), 'VALID',
                                        dimension_numbers=dn) + b_global[None, :, None]
    view_global = jnp.max(glob, axis=2, keepdims=True)   # global max pool
    dot = jnp.sum(view_global * local, axis=2)
    return jnp.sum(dot, axis=1)


if __name__ == "__main__":
    # Small shapes consistent with the module: feats is a (B, 1, feats_size)
    # one-channel signal; conv_y = feats_size channels, kernel = min(16, feats_size).
    feats_size = 32
    B = 2
    C = feats_size
    K = min(16, feats_size)
    L = feats_size

    key = jax.random.PRNGKey(0)
    kx, kwl, kbl, kwg, kbg = jax.random.split(key, 5)

    # PyTorch Conv1d default init: U(-1/sqrt(fan_in), +1/sqrt(fan_in)).
    bound = 1.0 / (1 * K) ** 0.5
    w_local = jax.random.uniform(kwl, (C, 1, K), jnp.float32, -bound, bound)
    b_local = jax.random.uniform(kbl, (C,), jnp.float32, -bound, bound)
    w_global = jax.random.uniform(kwg, (C, 1, K), jnp.float32, -bound, bound)
    b_global = jax.random.uniform(kbg, (C,), jnp.float32, -bound, bound)

    feats = jax.random.normal(kx, (B, 1, L), jnp.float32)

    ref = jax.block_until_ready(
        dnnltr_reference(feats, w_local, b_local, w_global, b_global))

    # f32 path: exact (up to fp reassociation) match with the reference.
    out_f32 = jax.block_until_ready(
        dnnltr_forward(feats, w_local, b_local, w_global, b_global,
                       compute_dtype=jnp.float32))
    assert out_f32.shape == (B,), out_f32.shape
    assert jnp.allclose(out_f32, ref, atol=1e-4, rtol=1e-4), (out_f32, ref)

    # Default bf16 MXU path (f32 accumulation): tighter relative check.
    out_bf16 = jax.block_until_ready(
        dnnltr_forward(feats, w_local, b_local, w_global, b_global))
    assert out_bf16.shape == (B,)
    assert bool(jnp.all(jnp.isfinite(out_bf16)))
    max_ref = float(jnp.max(jnp.abs(ref)))
    err = float(jnp.max(jnp.abs(out_bf16 - ref)))
    assert err <= 4e-2 * max_ref + 0.4, (err, max_ref, out_bf16, ref)

    print("KERNEL_OK")
</pallas_src>

<mosaic_0001>
module attributes {stable_mosaic.version = 11 : i64} {
  func.func @dnnltr_kernel(%arg0: i32, %arg1: memref<8x32xf32, #tpu.memory_space<vmem>>, %arg2: memref<32x32xf32, #tpu.memory_space<vmem>>, %arg3: memref<32x16xf32, #tpu.memory_space<vmem>>, %arg4: memref<1x32xf32, #tpu.memory_space<vmem>>, %arg5: memref<1x32xf32, #tpu.memory_space<vmem>>, %arg6: memref<1x1x8xf32, #tpu.memory_space<vmem>>) attributes {dimension_semantics = [#tpu.dimension_semantics<parallel>], iteration_bounds = array<i64: 1>, scalar_prefetch = 0 : i64, scratch_operands = 0 : i64, tpu.core_type = #tpu.core_type<tc>, window_params = [{transform_indices = @transform_0, window_bounds = array<i64: 8, 32>}, {pipeline_mode = #tpu.pipeline_mode<synchronous>, transform_indices = @transform_1, window_bounds = array<i64: 32, 32>}, {pipeline_mode = #tpu.pipeline_mode<synchronous>, transform_indices = @transform_2, window_bounds = array<i64: 32, 16>}, {pipeline_mode = #tpu.pipeline_mode<synchronous>, transform_indices = @transform_3, window_bounds = array<i64: 1, 32>}, {pipeline_mode = #tpu.pipeline_mode<synchronous>, transform_indices = @transform_4, window_bounds = array<i64: 1, 32>}, {transform_indices = @transform_5, window_bounds = array<i64: 1, 1, 8>}]} {
    %c0 = arith.constant 0 : index
    %c0_0 = arith.constant 0 : index
    %0 = vector.load %arg1[%c0, %c0_0] : memref<8x32xf32, #tpu.memory_space<vmem>>, vector<8x32xf32>
    %c0_1 = arith.constant 0 : index
    %c0_2 = arith.constant 0 : index
    %1 = vector.load %arg2[%c0_1, %c0_2] : memref<32x32xf32, #tpu.memory_space<vmem>>, vector<32x32xf32>
    %cst = arith.constant dense<0.000000e+00> : vector<8x32xf32>
    %2 = tpu.matmul %0, %1, %cst {dimension_numbers = #tpu.dot_dimension_numbers<[1], [0], [0], [1], [0, 0, 1, 1], [], []>} : vector<8x32xf32>, vector<32x32xf32>, vector<8x32xf32> -> vector<8x32xf32>
    %c0_3 = arith.constant 0 : index
    %c0_4 = arith.constant 0 : index
    %3 = vector.load %arg4[%c0_3, %c0_4] : memref<1x32xf32, #tpu.memory_space<vmem>>, vector<1x32xf32>
    %4 = vector.broadcast %3 : vector<1x32xf32> to vector<8x32xf32>
    %5 = arith.addf %2, %4 : vector<8x32xf32>
    %6 = vector.extract_strided_slice %0 {offsets = [0, 0], sizes = [8, 17], strides = [1, 1]} : vector<8x32xf32> to vector<8x17xf32>
    %7 = vector.extract_strided_slice %0 {offsets = [0, 1], sizes = [8, 17], strides = [1, 1]} : vector<8x32xf32> to vector<8x17xf32>
    %8 = vector.extract_strided_slice %0 {offsets = [0, 2], sizes = [8, 17], strides = [1, 1]} : vector<8x32xf32> to vector<8x17xf32>
    %9 = vector.extract_strided_slice %0 {offsets = [0, 3], sizes = [8, 17], strides = [1, 1]} : vector<8x32xf32> to vector<8x17xf32>
    %10 = vector.extract_strided_slice %0 {offsets = [0, 4], sizes = [8, 17], strides = [1, 1]} : vector<8x32xf32> to vector<8x17xf32>
    %11 = vector.extract_strided_slice %0 {offsets = [0, 5], sizes = [8, 17], strides = [1, 1]} : vector<8x32xf32> to vector<8x17xf32>
    %12 = vector.extract_strided_slice %0 {offsets = [0, 6], sizes = [8, 17], strides = [1, 1]} : vector<8x32xf32> to vector<8x17xf32>
    %13 = vector.extract_strided_slice %0 {offsets = [0, 7], sizes = [8, 17], strides = [1, 1]} : vector<8x32xf32> to vector<8x17xf32>
    %14 = vector.extract_strided_slice %0 {offsets = [0, 8], sizes = [8, 17], strides = [1, 1]} : vector<8x32xf32> to vector<8x17xf32>
    %15 = vector.extract_strided_slice %0 {offsets = [0, 9], sizes = [8, 17], strides = [1, 1]} : vector<8x32xf32> to vector<8x17xf32>
    %16 = vector.extract_strided_slice %0 {offsets = [0, 10], sizes = [8, 17], strides = [1, 1]} : vector<8x32xf32> to vector<8x17xf32>
    %17 = vector.extract_strided_slice %0 {offsets = [0, 11], sizes = [8, 17], strides = [1, 1]} : vector<8x32xf32> to vector<8x17xf32>
    %18 = vector.extract_strided_slice %0 {offsets = [0, 12], sizes = [8, 17], strides = [1, 1]} : vector<8x32xf32> to vector<8x17xf32>
    %19 = vector.extract_strided_slice %0 {offsets = [0, 13], sizes = [8, 17], strides = [1, 1]} : vector<8x32xf32> to vector<8x17xf32>
    %20 = vector.extract_strided_slice %0 {offsets = [0, 14], sizes = [8, 17], strides = [1, 1]} : vector<8x32xf32> to vector<8x17xf32>
    %21 = vector.extract_strided_slice %0 {offsets = [0, 15], sizes = [8, 17], strides = [1, 1]} : vector<8x32xf32> to vector<8x17xf32>
    %22 = vector.shape_cast %6 : vector<8x17xf32> to vector<8x1x17xf32>
    %23 = vector.shape_cast %7 : vector<8x17xf32> to vector<8x1x17xf32>
    %24 = vector.shape_cast %8 : vector<8x17xf32> to vector<8x1x17xf32>
    %25 = vector.shape_cast %9 : vector<8x17xf32> to vector<8x1x17xf32>
    %26 = vector.shape_cast %10 : vector<8x17xf32> to vector<8x1x17xf32>
    %27 = vector.shape_cast %11 : vector<8x17xf32> to vector<8x1x17xf32>
    %28 = vector.shape_cast %12 : vector<8x17xf32> to vector<8x1x17xf32>
    %29 = vector.shape_cast %13 : vector<8x17xf32> to vector<8x1x17xf32>
    %30 = vector.shape_cast %14 : vector<8x17xf32> to vector<8x1x17xf32>
    %31 = vector.shape_cast %15 : vector<8x17xf32> to vector<8x1x17xf32>
    %32 = vector.shape_cast %16 : vector<8x17xf32> to vector<8x1x17xf32>
    %33 = vector.shape_cast %17 : vector<8x17xf32> to vector<8x1x17xf32>
    %34 = vector.shape_cast %18 : vector<8x17xf32> to vector<8x1x17xf32>
    %35 = vector.shape_cast %19 : vector<8x17xf32> to vector<8x1x17xf32>
    %36 = vector.shape_cast %20 : vector<8x17xf32> to vector<8x1x17xf32>
    %37 = vector.shape_cast %21 : vector<8x17xf32> to vector<8x1x17xf32>
    %38 = tpu.concatenate %22, %23, %24, %25, %26, %27, %28, %29, %30, %31, %32, %33, %34, %35, %36, %37 in 1 : vector<8x1x17xf32>, vector<8x1x17xf32>, vector<8x1x17xf32>, vector<8x1x17xf32>, vector<8x1x17xf32>, vector<8x1x17xf32>, vector<8x1x17xf32>, vector<8x1x17xf32>, vector<8x1x17xf32>, vector<8x1x17xf32>, vector<8x1x17xf32>, vector<8x1x17xf32>, vector<8x1x17xf32>, vector<8x1x17xf32>, vector<8x1x17xf32>, vector<8x1x17xf32> -> vector<8x16x17xf32>
    %c0_5 = arith.constant 0 : index
    %c0_6 = arith.constant 0 : index
    %39 = vector.load %arg3[%c0_5, %c0_6] : memref<32x16xf32, #tpu.memory_space<vmem>>, vector<32x16xf32>
    %40 = vector.shape_cast %39 : vector<32x16xf32> to vector<1x32x16xf32>
    %41 = vector.shape_cast %40 : vector<1x32x16xf32> to vector<1x32x16xf32>
    %42 = vector.broadcast %41 : vector<1x32x16xf32> to vector<8x32x16xf32>
    "tpu.trace_start"() <{level = 10 : i32, message = "bck,bkt->bct"}> : () -> ()
    %cst_7 = arith.constant dense<0.000000e+00> : vector<8x32x17xf32>
    %43 = tpu.matmul %42, %38, %cst_7 {dimension_numbers = #tpu.dot_dimension_numbers<[2], [1], [1], [2], [0, 0, 0, 1, 1, 2], [0], [0]>} : vector<8x32x16xf32>, vector<8x16x17xf32>, vector<8x32x17xf32> -> vector<8x32x17xf32>
    "tpu.trace_stop"() : () -> ()
    %cst_8 = arith.constant dense<0xFF800000> : vector<8x32xf32>
    %44 = vector.multi_reduction <maximumf>, %43, %cst_8 [2] : vector<8x32x17xf32> to vector<8x32xf32>
    %c0_9 = arith.constant 0 : index
    %c0_10 = arith.constant 0 : index
    %45 = vector.load %arg5[%c0_9, %c0_10] : memref<1x32xf32, #tpu.memory_space<vmem>>, vector<1x32xf32>
    %46 = vector.broadcast %45 : vector<1x32xf32> to vector<8x32xf32>
    %47 = arith.addf %44, %46 : vector<8x32xf32>
    %48 = arith.mulf %47, %5 : vector<8x32xf32>
    %cst_11 = arith.constant dense<0.000000e+00> : vector<8xf32>
    %49 = vector.multi_reduction <add>, %48, %cst_11 [1] : vector<8x32xf32> to vector<8xf32>
    %50 = vector.shape_cast %49 : vector<8xf32> to vector<1x1x8xf32>
    %c0_12 = arith.constant 0 : index
    %c0_13 = arith.constant 0 : index
    %c0_14 = arith.constant 0 : index
    %51 = vector.load %arg6[%c0_12, %c0_13, %c0_14] : memref<1x1x8xf32, #tpu.memory_space<vmem>>, vector<1x1x8xf32>
    tpu.vector_store %arg6[%c0_12, %c0_13, %c0_14], %50 {strides = array<i32>} : memref<1x1x8xf32, #tpu.memory_space<vmem>>, vector<1x1x8xf32>,
    return
  }
  func.func @transform_0(%arg0: i32) -> (i32, i32) {
    %c0_i32 = arith.constant 0 : i32
    %c0_i32_0 = arith.constant 0 : i32
    return %arg0, %c0_i32 : i32, i32
  }
  func.func @transform_1(%arg0: i32) -> (i32, i32) {
    %c0_i32 = arith.constant 0 : i32
    %c0_i32_0 = arith.constant 0 : i32
    %c0_i32_1 = arith.constant 0 : i32
    return %c0_i32, %c0_i32_0 : i32, i32
  }
  func.func @transform_2(%arg0: i32) -> (i32, i32) {
    %c0_i32 = arith.constant 0 : i32
    %c0_i32_0 = arith.constant 0 : i32
    %c0_i32_1 = arith.constant 0 : i32
    return %c0_i32, %c0_i32_0 : i32, i32
  }
  func.func @transform_3(%arg0: i32) -> (i32, i32) {
    %c0_i32 = arith.constant 0 : i32
    %c0_i32_0 = arith.constant 0 : i32
    %c0_i32_1 = arith.constant 0 : i32
    return %c0_i32, %c0_i32_0 : i32, i32
  }
  func.func @transform_4(%arg0: i32) -> (i32, i32) {
    %c0_i32 = arith.constant 0 : i32
    %c0_i32_0 = arith.constant 0 : i32
    %c0_i32_1 = arith.constant 0 : i32
    return %c0_i32, %c0_i32_0 : i32, i32
  }
  func.func @transform_5(%arg0: i32) -> (i32, i32, i32) {
    %c0_i32 = arith.constant 0 : i32
    %c0_i32_0 = arith.constant 0 : i32
    %c0_i32_1 = arith.constant 0 : i32
    return %arg0, %c0_i32, %c0_i32_0 : i32, i32, i32
  }
}

</mosaic_0001>

<llo_original>
// kernel: tpu_custom_call.1
$region0: #{tpu_custom_call.1}
  #allocation0 [shape = 'u32[]', space=smem, size = 0x4, offset = 0x4, fixed_abs, tag = 'smem constant byte address 0x4 - core index']
  #allocation1 [shape = 'u32[144,128]{1,0:T(1,128)}', space=vmem, size = 0x12000, scoped, tag = 'internal scratch']
  %s0 = inlined_call_operand.vmem [shape: f32[8,32], index: 0, kind: input, shape index: {}]
  %s1 = inlined_call_operand.vmem [shape: f32[32,32], index: 1, kind: input, shape index: {}]
  %s2 = inlined_call_operand.vmem [shape: f32[32,16], index: 2, kind: input, shape index: {}]
  %s3 = inlined_call_operand.vmem [shape: f32[1,32], index: 3, kind: input, shape index: {}]
  %s4 = inlined_call_operand.vmem [shape: f32[1,32], index: 4, kind: input, shape index: {}]
  %s5 = inlined_call_operand.hbm [shape: f32[1,1,8], index: 5, kind: output, shape index: {}]
  %s6 = sld [smem:[#allocation0]]
  $region30: #{tpu_custom_call.1} parent=0
    _
  %s8 = ssub.s32 1, %s6
  %s9 = scalar_select 0, %s8, %s6
  $region1: #{tpu_custom_call.1} parent=0
    #allocation2 [shape = 'u8[512]{0}', space=vmem, size = 0x400, scoped, tag = 'output window, operand 0, single buffered']
    #allocation3 [shape = 's32[1]{0}', space=sflag, size = 0x4, scoped, tag = 'scoped memory for tpu_custom_call.1']
    %10 = vsyncpa [#allocation3], 0
    // Predicated region
    $region2: #{tpu_custom_call.1} parent=1 // pred_check
      _
    $region3: #{tpu_custom_call.1} parent=1 // pred_check_branch
      %12 = sbr.rel (0) target = $region5
    $region4: #{tpu_custom_call.1} parent=1 // pred_region
      _
    $region5: #{tpu_custom_call.1} parent=1 // pred_fallthru
      _
    // Predicated region
    $region6: #{tpu_custom_call.1} parent=1 // pred_check
      _
    $region7: #{tpu_custom_call.1} parent=1 // pred_check_branch
      %14 = sbr.rel (0) target = $region9
    $region8: #{tpu_custom_call.1} parent=1 // pred_region
      _
    $region9: #{tpu_custom_call.1} parent=1 // pred_fallthru
      _
    // Predicated region
    $region10: #{tpu_custom_call.1} parent=1 // pred_check
      _
    $region11: #{tpu_custom_call.1} parent=1 // pred_check_branch
      %16 = sbr.rel (0) target = $region13
    $region12: #{tpu_custom_call.1} parent=1 // pred_region
      _
    $region13: #{tpu_custom_call.1} parent=1 // pred_fallthru
      _
    // Predicated region
    $region14: #{tpu_custom_call.1} parent=1 // pred_check
      _
    $region15: #{tpu_custom_call.1} parent=1 // pred_check_branch
      %18 = sbr.rel (0) target = $region17
    $region16: #{tpu_custom_call.1} parent=1 // pred_region
      _
    $region17: #{tpu_custom_call.1} parent=1 // pred_fallthru
      _
    // Predicated region
    $region18: #{tpu_custom_call.1} parent=1 // pred_check
      _
    $region19: #{tpu_custom_call.1} parent=1 // pred_check_branch
      %20 = sbr.rel (0) target = $region21
    $region20: #{tpu_custom_call.1} parent=1 // pred_region
      _
    $region21: #{tpu_custom_call.1} parent=1 // pred_fallthru
      _
    %v21 = vld [vmem:[%s0] sm:$0xff]
    %v22 = vld [vmem:[%s1] sm:$0xff]
    %v23 = vld [vmem:[%s1 + $0x8] sm:$0xff]
    %v24 = vld [vmem:[%s1 + $0x10] sm:$0xff]
    %v25 = vld [vmem:[%s1 + $0x18] sm:$0xff]
    %v26 = vld [vmem:[%s3] sm:$0x1]
    %v28 = vlaneseq
    %v29 = vshrl.u32 %v28, 7
    %v30 = vsub.s32 0, %v29
    %v31 = vrot.slane %v26, %v30
    %vm33 = vcmask 261120
    %v35 = vsel %vm33, %v21, 0
    %37 = vmatprep.subr.mxu0 0.0
    %38 = vmatpush1.msra.mxu0 %v22
    %39 = vmatprep.subr.mxu0 0.0
    %40 = vmatpush1.msra.mxu0 %v23
    %41 = vmatprep.subr.mxu0 0.0
    %42 = vmatpush1.msra.mxu0 %v24
    %43 = vmatprep.subr.mxu0 0.0
    %44 = vmatpush1.msra.mxu0 %v25
    %45 = vmatprep.subr.mxu0 0.0
    %46 = vmatpush1.msra.mxu0 0.0
    %47 = vmatprep.subr.mxu0 0.0
    %48 = vmatpush1.msra.mxu0 0.0
    %49 = vmatprep.subr.mxu0 0.0
    %50 = vmatpush1.msra.mxu0 0.0
    %51 = vmatprep.subr.mxu0 0.0
    %52 = vmatpush1.msra.mxu0 0.0
    %53 = vmatprep.subr.mxu0 0.0
    %54 = vmatpush1.msra.mxu0 0.0
    %55 = vmatprep.subr.mxu0 0.0
    %56 = vmatpush1.msra.mxu0 0.0
    %57 = vmatprep.subr.mxu0 0.0
    %58 = vmatpush1.msra.mxu0 0.0
    %59 = vmatprep.subr.mxu0 0.0
    %60 = vmatpush1.msra.mxu0 0.0
    %61 = vmatprep.subr.mxu0 0.0
    %62 = vmatpush1.msra.mxu0 0.0
    %63 = vmatprep.subr.mxu0 0.0
    %64 = vmatpush1.msra.mxu0 0.0
    %65 = vmatprep.subr.mxu0 0.0
    %66 = vmatpush1.msra.mxu0 0.0
    %67 = vmatprep.subr.mxu0 0.0
    %68 = vmatpush1.msra.mxu0 0.0
    %69 = vmatprep.subr.mxu0 0.0
    %70 = vmatpush1.msra.mxu0 0.0
    %71 = vmatprep.subr.mxu0 0.0
    %72 = vmatpush1.msra.mxu0 0.0
    %73 = vmatprep.subr.mxu0 0.0
    %74 = vmatpush1.msra.mxu0 0.0
    %75 = vmatprep.subr.mxu0 0.0
    %76 = vmatpush1.msra.mxu0 0.0
    %77 = vmatprep.subr.mxu0 0.0
    %78 = vmatpush1.msra.mxu0 0.0
    %79 = vmatprep.subr.mxu0 0.0
    %80 = vmatpush1.msra.mxu0 0.0
    %81 = vmatprep.subr.mxu0 0.0
    %82 = vmatpush1.msra.mxu0 0.0
    %83 = vmatprep.subr.mxu0 0.0
    %84 = vmatpush1.msra.mxu0 0.0
    %85 = vmatprep.subr.mxu0 0.0
    %86 = vmatpush1.msra.mxu0 0.0
    %87 = vmatprep.subr.mxu0 0.0
    %88 = vmatpush1.msra.mxu0 0.0
    %89 = vmatprep.subr.mxu0 0.0
    %90 = vmatpush1.msra.mxu0 0.0
    %91 = vmatprep.subr.mxu0 0.0
    %92 = vmatpush1.msra.mxu0 0.0
    %93 = vmatprep.subr.mxu0 0.0
    %94 = vmatpush1.msra.mxu0 0.0
    %95 = vmatprep.subr.mxu0 0.0
    %96 = vmatpush1.msra.mxu0 0.0
    %97 = vmatprep.subr.mxu0 0.0
    %98 = vmatpush1.msra.mxu0 0.0
    %99 = vmatprep.subr.mxu0 0.0
    %100 = vmatpush1.msra.mxu0 0.0
    %101 = vmatprep.mubr.f32.mxu0 0.0
    %102 = vmatmul.mubr.f32.gmra.mrb[0].mxu0 %v35
    %v103 = vpop.f32.mrb[0].mxu0
    %v104 = vadd.f32 %v31, %v103
    %v105 = vpop.f32.mrb[0].mxu0
    %106 = vdwg.mxu0
    %v107 = vcombine.high %v21, %v21
    %v109 = vunpack.c.l.s4 1966171168
    %v110 = vunpack.c.0.s8 %v109
    %v111 = vlaneseq
    %v112 = vshrl.u32 %v111, 7
    %v113 = vsub.s32 %v110, %v112
    %v114 = vrot.slane %v21, %v113
    %v116 = vunpack.c.l.s4 1966171168
    %v117 = vunpack.c.0.s8 %v116
    %v118 = vlaneseq
    %v119 = vshrl.u32 %v118, 7
    %v120 = vsub.s32 %v117, %v119
    %v121 = vrot.slane %v107, %v120
    %v122 = vcombine.high %v114, %v114
    %v123 = vcombine.high %v121, %v121
    %v125 = vunpack.c.l.s4 1966171168
    %v126 = vunpack.c.0.s8 %v125
    %v127 = vlaneseq
    %v128 = vshrl.u32 %v127, 7
    %v129 = vsub.s32 %v126, %v128
    %v130 = vrot.slane %v114, %v129
    %v132 = vunpack.c.l.s4 1966171168
    %v133 = vunpack.c.0.s8 %v132
    %v134 = vlaneseq
    %v135 = vshrl.u32 %v134, 7
    %v136 = vsub.s32 %v133, %v135
    %v137 = vrot.slane %v121, %v136
    %v139 = vunpack.c.l.s4 1966171168
    %v140 = vunpack.c.0.s8 %v139
    %v141 = vlaneseq
    %v142 = vshrl.u32 %v141, 7
    %v143 = vsub.s32 %v140, %v142
    %v144 = vrot.slane %v122, %v143
    %v146 = vunpack.c.l.s4 1966171168
    %v147 = vunpack.c.0.s8 %v146
    %v148 = vlaneseq
    %v149 = vshrl.u32 %v148, 7
    %v150 = vsub.s32 %v147, %v149
    %v151 = vrot.slane %v123, %v150
    %v152 = vcombine.high %v130, %v130
    %v153 = vcombine.high %v137, %v137
    %v154 = vcombine.high %v144, %v144
    %v155 = vcombine.high %v151, %v151
    %v164 = vlaneseq
    %v165 = vshrl.u32 %v164, 7
    %v166 = vsub.s32 0, %v165
    %v167 = vrot.slane %v130, %v166
    %v168 = vlaneseq
    %v169 = vshrl.u32 %v168, 7
    %v170 = vsub.s32 0, %v169
    %v171 = vrot.slane %v144, %v170
    %v172 = vlaneseq
    %v173 = vshrl.u32 %v172, 7
    %v174 = vsub.s32 0, %v173
    %v175 = vrot.slane %v152, %v174
    %v176 = vlaneseq
    %v177 = vshrl.u32 %v176, 7
    %v178 = vsub.s32 0, %v177
    %v179 = vrot.slane %v154, %v178
    %v180 = vlaneseq
    %v181 = vshrl.u32 %v180, 7
    %v182 = vsub.s32 0, %v181
    %v183 = vrot.slane %v137, %v182
    %v184 = vlaneseq
    %v185 = vshrl.u32 %v184, 7
    %v186 = vsub.s32 0, %v185
    %v187 = vrot.slane %v151, %v186
    %v188 = vlaneseq
    %v189 = vshrl.u32 %v188, 7
    %v190 = vsub.s32 0, %v189
    %v191 = vrot.slane %v153, %v190
    %v192 = vlaneseq
    %v193 = vshrl.u32 %v192, 7
    %v194 = vsub.s32 0, %v193
    %v195 = vrot.slane %v155, %v194
    %196 = vrot.lane.b32.xlu0 %v167, 127
    %v197 = vpop.permute.xlu0 %196
    %198 = vrot.lane.b32.xlu0 %v171, 127
    %v199 = vpop.permute.xlu0 %198
    %200 = vrot.lane.b32.xlu0 %v175, 127
    %v201 = vpop.permute.xlu0 %200
    %202 = vrot.lane.b32.xlu0 %v179, 127
    %v203 = vpop.permute.xlu0 %202
    %204 = vrot.lane.b32.xlu0 %v183, 127
    %v205 = vpop.permute.xlu0 %204
    %206 = vrot.lane.b32.xlu0 %v187, 127
    %v207 = vpop.permute.xlu0 %206
    %208 = vrot.lane.b32.xlu0 %v191, 127
    %v209 = vpop.permute.xlu0 %208
    %210 = vrot.lane.b32.xlu0 %v195, 127
    %v211 = vpop.permute.xlu0 %210
    %220 = vrot.lane.b32.xlu0 %v167, 126
    %v221 = vpop.permute.xlu0 %220
    %222 = vrot.lane.b32.xlu0 %v171, 126
    %v223 = vpop.permute.xlu0 %222
    %224 = vrot.lane.b32.xlu0 %v175, 126
    %v225 = vpop.permute.xlu0 %224
    %226 = vrot.lane.b32.xlu0 %v179, 126
    %v227 = vpop.permute.xlu0 %226
    %228 = vrot.lane.b32.xlu0 %v183, 126
    %v229 = vpop.permute.xlu0 %228
    %230 = vrot.lane.b32.xlu0 %v187, 126
    %v231 = vpop.permute.xlu0 %230
    %232 = vrot.lane.b32.xlu0 %v191, 126
    %v233 = vpop.permute.xlu0 %232
    %234 = vrot.lane.b32.xlu0 %v195, 126
    %v235 = vpop.permute.xlu0 %234
    %244 = vrot.lane.b32.xlu0 %v167, 125
    %v245 = vpop.permute.xlu0 %244
    %246 = vrot.lane.b32.xlu0 %v171, 125
    %v247 = vpop.permute.xlu0 %246
    %248 = vrot.lane.b32.xlu0 %v175, 125
    %v249 = vpop.permute.xlu0 %248
    %250 = vrot.lane.b32.xlu0 %v179, 125
    %v251 = vpop.permute.xlu0 %250
    %252 = vrot.lane.b32.xlu0 %v183, 125
    %v253 = vpop.permute.xlu0 %252
    %254 = vrot.lane.b32.xlu0 %v187, 125
    %v255 = vpop.permute.xlu0 %254
    %256 = vrot.lane.b32.xlu0 %v191, 125
    %v257 = vpop.permute.xlu0 %256
    %258 = vrot.lane.b32.xlu0 %v195, 125
    %v259 = vpop.permute.xlu0 %258
    %268 = vrot.lane.b32.xlu0 %v167, 124
    %v269 = vpop.permute.xlu0 %268
    %270 = vrot.lane.b32.xlu0 %v171, 124
    %v271 = vpop.permute.xlu0 %270
    %272 = vrot.lane.b32.xlu0 %v175, 124
    %v273 = vpop.permute.xlu0 %272
    %274 = vrot.lane.b32.xlu0 %v179, 124
    %v275 = vpop.permute.xlu0 %274
    %276 = vrot.lane.b32.xlu0 %v183, 124
    %v277 = vpop.permute.xlu0 %276
    %278 = vrot.lane.b32.xlu0 %v187, 124
    %v279 = vpop.permute.xlu0 %278
    %280 = vrot.lane.b32.xlu0 %v191, 124
    %v281 = vpop.permute.xlu0 %280
    %282 = vrot.lane.b32.xlu0 %v195, 124
    %v283 = vpop.permute.xlu0 %282
    %292 = vrot.lane.b32.xlu0 %v167, 123
    %v293 = vpop.permute.xlu0 %292
    %294 = vrot.lane.b32.xlu0 %v171, 123
    %v295 = vpop.permute.xlu0 %294
    %296 = vrot.lane.b32.xlu0 %v175, 123
    %v297 = vpop.permute.xlu0 %296
    %298 = vrot.lane.b32.xlu0 %v179, 123
    %v299 = vpop.permute.xlu0 %298
    %300 = vrot.lane.b32.xlu0 %v183, 123
    %v301 = vpop.permute.xlu0 %300
    %302 = vrot.lane.b32.xlu0 %v187, 123
    %v303 = vpop.permute.xlu0 %302
    %304 = vrot.lane.b32.xlu0 %v191, 123
    %v305 = vpop.permute.xlu0 %304
    %306 = vrot.lane.b32.xlu0 %v195, 123
    %v307 = vpop.permute.xlu0 %306
    %316 = vrot.lane.b32.xlu0 %v167, 122
    %v317 = vpop.permute.xlu0 %316
    %318 = vrot.lane.b32.xlu0 %v171, 122
    %v319 = vpop.permute.xlu0 %318
    %320 = vrot.lane.b32.xlu0 %v175, 122
    %v321 = vpop.permute.xlu0 %320
    %322 = vrot.lane.b32.xlu0 %v179, 122
    %v323 = vpop.permute.xlu0 %322
    %324 = vrot.lane.b32.xlu0 %v183, 122
    %v325 = vpop.permute.xlu0 %324
    %326 = vrot.lane.b32.xlu0 %v187, 122
    %v327 = vpop.permute.xlu0 %326
    %328 = vrot.lane.b32.xlu0 %v191, 122
    %v329 = vpop.permute.xlu0 %328
    %330 = vrot.lane.b32.xlu0 %v195, 122
    %v331 = vpop.permute.xlu0 %330
    %340 = vrot.lane.b32.xlu0 %v167, 121
    %v341 = vpop.permute.xlu0 %340
    %342 = vrot.lane.b32.xlu0 %v171, 121
    %v343 = vpop.permute.xlu0 %342
    %344 = vrot.lane.b32.xlu0 %v175, 121
    %v345 = vpop.permute.xlu0 %344
    %346 = vrot.lane.b32.xlu0 %v179, 121
    %v347 = vpop.permute.xlu0 %346
    %348 = vrot.lane.b32.xlu0 %v183, 121
    %v349 = vpop.permute.xlu0 %348
    %350 = vrot.lane.b32.xlu0 %v187, 121
    %v351 = vpop.permute.xlu0 %350
    %352 = vrot.lane.b32.xlu0 %v191, 121
    %v353 = vpop.permute.xlu0 %352
    %354 = vrot.lane.b32.xlu0 %v195, 121
    %v355 = vpop.permute.xlu0 %354
    %364 = vrot.lane.b32.xlu0 %v167, 120
    %v365 = vpop.permute.xlu0 %364
    %366 = vrot.lane.b32.xlu0 %v171, 120
    %v367 = vpop.permute.xlu0 %366
    %368 = vrot.lane.b32.xlu0 %v175, 120
    %v369 = vpop.permute.xlu0 %368
    %370 = vrot.lane.b32.xlu0 %v179, 120
    %v371 = vpop.permute.xlu0 %370
    %372 = vrot.lane.b32.xlu0 %v183, 120
    %v373 = vpop.permute.xlu0 %372
    %374 = vrot.lane.b32.xlu0 %v187, 120
    %v375 = vpop.permute.xlu0 %374
    %376 = vrot.lane.b32.xlu0 %v191, 120
    %v377 = vpop.permute.xlu0 %376
    %378 = vrot.lane.b32.xlu0 %v195, 120
    %v379 = vpop.permute.xlu0 %378
    %388 = vrot.lane.b32.xlu0 %v167, 119
    %v389 = vpop.permute.xlu0 %388
    %390 = vrot.lane.b32.xlu0 %v171, 119
    %v391 = vpop.permute.xlu0 %390
    %392 = vrot.lane.b32.xlu0 %v175, 119
    %v393 = vpop.permute.xlu0 %392
    %394 = vrot.lane.b32.xlu0 %v179, 119
    %v395 = vpop.permute.xlu0 %394
    %396 = vrot.lane.b32.xlu0 %v183, 119
    %v397 = vpop.permute.xlu0 %396
    %398 = vrot.lane.b32.xlu0 %v187, 119
    %v399 = vpop.permute.xlu0 %398
    %400 = vrot.lane.b32.xlu0 %v191, 119
    %v401 = vpop.permute.xlu0 %400
    %402 = vrot.lane.b32.xlu0 %v195, 119
    %v403 = vpop.permute.xlu0 %402
    %412 = vrot.lane.b32.xlu0 %v167, 118
    %v413 = vpop.permute.xlu0 %412
    %414 = vrot.lane.b32.xlu0 %v171, 118
    %v415 = vpop.permute.xlu0 %414
    %416 = vrot.lane.b32.xlu0 %v175, 118
    %v417 = vpop.permute.xlu0 %416
    %418 = vrot.lane.b32.xlu0 %v179, 118
    %v419 = vpop.permute.xlu0 %418
    %420 = vrot.lane.b32.xlu0 %v183, 118
    %v421 = vpop.permute.xlu0 %420
    %422 = vrot.lane.b32.xlu0 %v187, 118
    %v423 = vpop.permute.xlu0 %422
    %424 = vrot.lane.b32.xlu0 %v191, 118
    %v425 = vpop.permute.xlu0 %424
    %426 = vrot.lane.b32.xlu0 %v195, 118
    %v427 = vpop.permute.xlu0 %426
    %436 = vrot.lane.b32.xlu0 %v167, 117
    %v437 = vpop.permute.xlu0 %436
    %438 = vrot.lane.b32.xlu0 %v171, 117
    %v439 = vpop.permute.xlu0 %438
    %440 = vrot.lane.b32.xlu0 %v175, 117
    %v441 = vpop.permute.xlu0 %440
    %442 = vrot.lane.b32.xlu0 %v179, 117
    %v443 = vpop.permute.xlu0 %442
    %444 = vrot.lane.b32.xlu0 %v183, 117
    %v445 = vpop.permute.xlu0 %444
    %446 = vrot.lane.b32.xlu0 %v187, 117
    %v447 = vpop.permute.xlu0 %446
    %448 = vrot.lane.b32.xlu0 %v191, 117
    %v449 = vpop.permute.xlu0 %448
    %450 = vrot.lane.b32.xlu0 %v195, 117
    %v451 = vpop.permute.xlu0 %450
    %460 = vrot.lane.b32.xlu0 %v167, 116
    %v461 = vpop.permute.xlu0 %460
    %462 = vrot.lane.b32.xlu0 %v171, 116
    %v463 = vpop.permute.xlu0 %462
    %464 = vrot.lane.b32.xlu0 %v175, 116
    %v465 = vpop.permute.xlu0 %464
    %466 = vrot.lane.b32.xlu0 %v179, 116
    %v467 = vpop.permute.xlu0 %466
    %468 = vrot.lane.b32.xlu0 %v183, 116
    %v469 = vpop.permute.xlu0 %468
    %470 = vrot.lane.b32.xlu0 %v187, 116
    %v471 = vpop.permute.xlu0 %470
    %472 = vrot.lane.b32.xlu0 %v191, 116
    %v473 = vpop.permute.xlu0 %472
    %474 = vrot.lane.b32.xlu0 %v195, 116
    %v475 = vpop.permute.xlu0 %474
    %484 = vrot.lane.b32.xlu0 %v167, 115
    %v485 = vpop.permute.xlu0 %484
    %486 = vrot.lane.b32.xlu0 %v171, 115
    %v487 = vpop.permute.xlu0 %486
    %488 = vrot.lane.b32.xlu0 %v175, 115
    %v489 = vpop.permute.xlu0 %488
    %490 = vrot.lane.b32.xlu0 %v179, 115
    %v491 = vpop.permute.xlu0 %490
    %492 = vrot.lane.b32.xlu0 %v183, 115
    %v493 = vpop.permute.xlu0 %492
    %494 = vrot.lane.b32.xlu0 %v187, 115
    %v495 = vpop.permute.xlu0 %494
    %496 = vrot.lane.b32.xlu0 %v191, 115
    %v497 = vpop.permute.xlu0 %496
    %498 = vrot.lane.b32.xlu0 %v195, 115
    %v499 = vpop.permute.xlu0 %498
    %508 = vrot.lane.b32.xlu0 %v167, 114
    %v509 = vpop.permute.xlu0 %508
    %510 = vrot.lane.b32.xlu0 %v171, 114
    %v511 = vpop.permute.xlu0 %510
    %512 = vrot.lane.b32.xlu0 %v175, 114
    %v513 = vpop.permute.xlu0 %512
    %514 = vrot.lane.b32.xlu0 %v179, 114
    %v515 = vpop.permute.xlu0 %514
    %516 = vrot.lane.b32.xlu0 %v183, 114
    %v517 = vpop.permute.xlu0 %516
    %518 = vrot.lane.b32.xlu0 %v187, 114
    %v519 = vpop.permute.xlu0 %518
    %520 = vrot.lane.b32.xlu0 %v191, 114
    %v521 = vpop.permute.xlu0 %520
    %522 = vrot.lane.b32.xlu0 %v195, 114
    %v523 = vpop.permute.xlu0 %522
    %532 = vrot.lane.b32.xlu0 %v167, 113
    %v533 = vpop.permute.xlu0 %532
    %534 = vrot.lane.b32.xlu0 %v171, 113
    %v535 = vpop.permute.xlu0 %534
    %536 = vrot.lane.b32.xlu0 %v175, 113
    %v537 = vpop.permute.xlu0 %536
    %538 = vrot.lane.b32.xlu0 %v179, 113
    %v539 = vpop.permute.xlu0 %538
    %540 = vrot.lane.b32.xlu0 %v183, 113
    %v541 = vpop.permute.xlu0 %540
    %542 = vrot.lane.b32.xlu0 %v187, 113
    %v543 = vpop.permute.xlu0 %542
    %544 = vrot.lane.b32.xlu0 %v191, 113
    %v545 = vpop.permute.xlu0 %544
    %546 = vrot.lane.b32.xlu0 %v195, 113
    %v547 = vpop.permute.xlu0 %546
    %vm556 = vcmask 1040384
    %v557 = vsel %vm556, %v130, %v197
    %v558 = vsel %vm556, %v144, %v199
    %v559 = vsel %vm556, %v152, %v201
    %v560 = vsel %vm556, %v154, %v203
    %v561 = vsel %vm556, %v137, %v205
    %v562 = vsel %vm556, %v151, %v207
    %v563 = vsel %vm556, %v153, %v209
    %v564 = vsel %vm556, %v155, %v211
    %vm565 = vcmask 1041408
    %v566 = vsel %vm565, %v557, %v221
    %v567 = vsel %vm565, %v558, %v223
    %v568 = vsel %vm565, %v559, %v225
    %v569 = vsel %vm565, %v560, %v227
    %v570 = vsel %vm565, %v561, %v229
    %v571 = vsel %vm565, %v562, %v231
    %v572 = vsel %vm565, %v563, %v233
    %v573 = vsel %vm565, %v564, %v235
    %vm574 = vcmask 1042432
    %v575 = vsel %vm574, %v566, %v245
    %v576 = vsel %vm574, %v567, %v247
    %v577 = vsel %vm574, %v568, %v249
    %v578 = vsel %vm574, %v569, %v251
    %v579 = vsel %vm574, %v570, %v253
    %v580 = vsel %vm574, %v571, %v255
    %v581 = vsel %vm574, %v572, %v257
    %v582 = vsel %vm574, %v573, %v259
    %vm583 = vcmask 1043456
    %v584 = vsel %vm583, %v575, %v269
    %v585 = vsel %vm583, %v576, %v271
    %v586 = vsel %vm583, %v577, %v273
    %v587 = vsel %vm583, %v578, %v275
    %v588 = vsel %vm583, %v579, %v277
    %v589 = vsel %vm583, %v580, %v279
    %v590 = vsel %vm583, %v581, %v281
    %v591 = vsel %vm583, %v582, %v283
    %vm592 = vcmask 1044480
    %v593 = vsel %vm592, %v584, %v293
    %v594 = vsel %vm592, %v585, %v295
    %v595 = vsel %vm592, %v586, %v297
    %v596 = vsel %vm592, %v587, %v299
    %v597 = vsel %vm592, %v588, %v301
    %v598 = vsel %vm592, %v589, %v303
    %v599 = vsel %vm592, %v590, %v305
    %v600 = vsel %vm592, %v591, %v307
    %vm601 = vcmask 1045504
    %v602 = vsel %vm601, %v593, %v317
    %v603 = vsel %vm601, %v594, %v319
    %v604 = vsel %vm601, %v595, %v321
    %v605 = vsel %vm601, %v596, %v323
    %v606 = vsel %vm601, %v597, %v325
    %v607 = vsel %vm601, %v598, %v327
    %v608 = vsel %vm601, %v599, %v329
    %v609 = vsel %vm601, %v600, %v331
    %vm610 = vcmask 1046528
    %v611 = vsel %vm610, %v602, %v341
    %v612 = vsel %vm610, %v603, %v343
    %v613 = vsel %vm610, %v604, %v345
    %v614 = vsel %vm610, %v605, %v347
    %v615 = vsel %vm610, %v606, %v349
    %v616 = vsel %vm610, %v607, %v351
    %v617 = vsel %vm610, %v608, %v353
    %v618 = vsel %vm610, %v609, %v355
    %v619 = vsel %vm556, %v365, %v389
    %v620 = vsel %vm556, %v367, %v391
    %v621 = vsel %vm556, %v369, %v393
    %v622 = vsel %vm556, %v371, %v395
    %v623 = vsel %vm556, %v373, %v397
    %v624 = vsel %vm556, %v375, %v399
    %v625 = vsel %vm556, %v377, %v401
    %v626 = vsel %vm556, %v379, %v403
    %v627 = vsel %vm565, %v619, %v413
    %v628 = vsel %vm565, %v620, %v415
    %v629 = vsel %vm565, %v621, %v417
    %v630 = vsel %vm565, %v622, %v419
    %v631 = vsel %vm565, %v623, %v421
    %v632 = vsel %vm565, %v624, %v423
    %v633 = vsel %vm565, %v625, %v425
    %v634 = vsel %vm565, %v626, %v427
    %v635 = vsel %vm574, %v627, %v437
    %v636 = vsel %vm574, %v628, %v439
    %v637 = vsel %vm574, %v629, %v441
    %v638 = vsel %vm574, %v630, %v443
    %v639 = vsel %vm574, %v631, %v445
    %v640 = vsel %vm574, %v632, %v447
    %v641 = vsel %vm574, %v633, %v449
    %v642 = vsel %vm574, %v634, %v451
    %v643 = vsel %vm583, %v635, %v461
    %v644 = vsel %vm583, %v636, %v463
    %v645 = vsel %vm583, %v637, %v465
    %v646 = vsel %vm583, %v638, %v467
    %v647 = vsel %vm583, %v639, %v469
    %v648 = vsel %vm583, %v640, %v471
    %v649 = vsel %vm583, %v641, %v473
    %v650 = vsel %vm583, %v642, %v475
    %v651 = vsel %vm592, %v643, %v485
    %v652 = vsel %vm592, %v644, %v487
    %v653 = vsel %vm592, %v645, %v489
    %v654 = vsel %vm592, %v646, %v491
    %v655 = vsel %vm592, %v647, %v493
    %v656 = vsel %vm592, %v648, %v495
    %v657 = vsel %vm592, %v649, %v497
    %v658 = vsel %vm592, %v650, %v499
    %v659 = vsel %vm601, %v651, %v509
    %v660 = vsel %vm601, %v652, %v511
    %v661 = vsel %vm601, %v653, %v513
    %v662 = vsel %vm601, %v654, %v515
    %v663 = vsel %vm601, %v655, %v517
    %v664 = vsel %vm601, %v656, %v519
    %v665 = vsel %vm601, %v657, %v521
    %v666 = vsel %vm601, %v658, %v523
    %v667 = vsel %vm610, %v659, %v533
    %v668 = vsel %vm610, %v660, %v535
    %v669 = vsel %vm610, %v661, %v537
    %v670 = vsel %vm610, %v662, %v539
    %v671 = vsel %vm610, %v663, %v541
    %v672 = vsel %vm610, %v664, %v543
    %v673 = vsel %vm610, %v665, %v545
    %v674 = vsel %vm610, %v666, %v547
    %v675 = vld [vmem:[%s2] sm:$0xff]
    %v676 = vld [vmem:[%s2 + $0x8] sm:$0xff]
    %v677 = vld [vmem:[%s2 + $0x10] sm:$0xff]
    %v678 = vld [vmem:[%s2 + $0x18] sm:$0xff]
    %vm679 = vcmask 130048
    %v681 = vsel %vm679, %v675, 0
    %v684 = vsel %vm679, %v676, 0
    %v687 = vsel %vm679, %v677, 0
    %v690 = vsel %vm679, %v678, 0
    %692 = vmatprep.subr.mxu0 0.0
    %693 = vmatpush1.msra.mxu0 %v611
    %694 = vmatprep.subr.mxu0 0.0
    %695 = vmatpush1.msra.mxu0 %v667
    %696 = vmatprep.subr.mxu0 0.0
    %697 = vmatpush1.msra.mxu0 0.0
    %698 = vmatprep.subr.mxu0 0.0
    %699 = vmatpush1.msra.mxu0 0.0
    %700 = vmatprep.subr.mxu0 0.0
    %701 = vmatpush1.msra.mxu0 0.0
    %702 = vmatprep.subr.mxu0 0.0
    %703 = vmatpush1.msra.mxu0 0.0
    %704 = vmatprep.subr.mxu0 0.0
    %705 = vmatpush1.msra.mxu0 0.0
    %706 = vmatprep.subr.mxu0 0.0
    %707 = vmatpush1.msra.mxu0 0.0
    %708 = vmatprep.subr.mxu0 0.0
    %709 = vmatpush1.msra.mxu0 0.0
    %710 = vmatprep.subr.mxu0 0.0
    %711 = vmatpush1.msra.mxu0 0.0
    %712 = vmatprep.subr.mxu0 0.0
    %713 = vmatpush1.msra.mxu0 0.0
    %714 = vmatprep.subr.mxu0 0.0
    %715 = vmatpush1.msra.mxu0 0.0
    %716 = vmatprep.subr.mxu0 0.0
    %717 = vmatpush1.msra.mxu0 0.0
    %718 = vmatprep.subr.mxu0 0.0
    %719 = vmatpush1.msra.mxu0 0.0
    %720 = vmatprep.subr.mxu0 0.0
    %721 = vmatpush1.msra.mxu0 0.0
    %722 = vmatprep.subr.mxu0 0.0
    %723 = vmatpush1.msra.mxu0 0.0
    %724 = vmatprep.subr.mxu0 0.0
    %725 = vmatpush1.msra.mxu0 0.0
    %726 = vmatprep.subr.mxu0 0.0
    %727 = vmatpush1.msra.mxu0 0.0
    %728 = vmatprep.subr.mxu0 0.0
    %729 = vmatpush1.msra.mxu0 0.0
    %730 = vmatprep.subr.mxu0 0.0
    %731 = vmatpush1.msra.mxu0 0.0
    %732 = vmatprep.subr.mxu0 0.0
    %733 = vmatpush1.msra.mxu0 0.0
    %734 = vmatprep.subr.mxu0 0.0
    %735 = vmatpush1.msra.mxu0 0.0
    %736 = vmatprep.subr.mxu0 0.0
    %737 = vmatpush1.msra.mxu0 0.0
    %738 = vmatprep.subr.mxu0 0.0
    %739 = vmatpush1.msra.mxu0 0.0
    %740 = vmatprep.subr.mxu0 0.0
    %741 = vmatpush1.msra.mxu0 0.0
    %742 = vmatprep.subr.mxu0 0.0
    %743 = vmatpush1.msra.mxu0 0.0
    %744 = vmatprep.subr.mxu0 0.0
    %745 = vmatpush1.msra.mxu0 0.0
    %746 = vmatprep.subr.mxu0 0.0
    %747 = vmatpush1.msra.mxu0 0.0
    %748 = vmatprep.subr.mxu0 0.0
    %749 = vmatpush1.msra.mxu0 0.0
    %750 = vmatprep.subr.mxu0 0.0
    %751 = vmatpush1.msra.mxu0 0.0
    %752 = vmatprep.subr.mxu0 0.0
    %753 = vmatpush1.msra.mxu0 0.0
    %754 = vmatprep.subr.mxu0 0.0
    %755 = vmatpush1.msra.mxu0 0.0
    %756 = vmatprep.mubr.f32.mxu0 0.0
    %757 = vmatmul.mubr.f32.gmra.mrb[0].mxu0 %v681
    %v758 = vpop.f32.mrb[0].mxu0
    %v759 = vadd.f32 0.0, %v758
    %v760 = vpop.f32.mrb[0].mxu0
    %761 = vmatprep.mubr.f32.mxu0 0.0
    %762 = vmatmul.mubr.f32.gmra.mrb[0].mxu0 %v684
    %v763 = vpop.f32.mrb[0].mxu0
    %v764 = vadd.f32 0.0, %v763
    %v765 = vpop.f32.mrb[0].mxu0
    %766 = vmatprep.mubr.f32.mxu0 0.0
    %767 = vmatmul.mubr.f32.gmra.mrb[0].mxu0 %v687
    %v768 = vpop.f32.mrb[0].mxu0
    %v769 = vadd.f32 0.0, %v768
    %v770 = vpop.f32.mrb[0].mxu0
    %771 = vmatprep.mubr.f32.mxu0 0.0
    %772 = vmatmul.mubr.f32.gmra.mrb[0].mxu0 %v690
    %v773 = vpop.f32.mrb[0].mxu0
    %v774 = vadd.f32 0.0, %v773
    %v775 = vpop.f32.mrb[0].mxu0
    %776 = vdwg.mxu0
    %777 = vmatprep.subr.mxu0 0.0
    %778 = vmatpush1.msra.mxu0 %v612
    %779 = vmatprep.subr.mxu0 0.0
    %780 = vmatpush1.msra.mxu0 %v668
    %781 = vmatprep.subr.mxu0 0.0
    %782 = vmatpush1.msra.mxu0 0.0
    %783 = vmatprep.subr.mxu0 0.0
    %784 = vmatpush1.msra.mxu0 0.0
    %785 = vmatprep.subr.mxu0 0.0
    %786 = vmatpush1.msra.mxu0 0.0
    %787 = vmatprep.subr.mxu0 0.0
    %788 = vmatpush1.msra.mxu0 0.0
    %789 = vmatprep.subr.mxu0 0.0
    %790 = vmatpush1.msra.mxu0 0.0
    %791 = vmatprep.subr.mxu0 0.0
    %792 = vmatpush1.msra.mxu0 0.0
    %793 = vmatprep.subr.mxu0 0.0
    %794 = vmatpush1.msra.mxu0 0.0
    %795 = vmatprep.subr.mxu0 0.0
    %796 = vmatpush1.msra.mxu0 0.0
    %797 = vmatprep.subr.mxu0 0.0
    %798 = vmatpush1.msra.mxu0 0.0
    %799 = vmatprep.subr.mxu0 0.0
    %800 = vmatpush1.msra.mxu0 0.0
    %801 = vmatprep.subr.mxu0 0.0
    %802 = vmatpush1.msra.mxu0 0.0
    %803 = vmatprep.subr.mxu0 0.0
    %804 = vmatpush1.msra.mxu0 0.0
    %805 = vmatprep.subr.mxu0 0.0
    %806 = vmatpush1.msra.mxu0 0.0
    %807 = vmatprep.subr.mxu0 0.0
    %808 = vmatpush1.msra.mxu0 0.0
    %809 = vmatprep.subr.mxu0 0.0
    %810 = vmatpush1.msra.mxu0 0.0
    %811 = vmatprep.subr.mxu0 0.0
    %812 = vmatpush1.msra.mxu0 0.0
    %813 = vmatprep.subr.mxu0 0.0
    %814 = vmatpush1.msra.mxu0 0.0
    %815 = vmatprep.subr.mxu0 0.0
    %816 = vmatpush1.msra.mxu0 0.0
    %817 = vmatprep.subr.mxu0 0.0
    %818 = vmatpush1.msra.mxu0 0.0
    %819 = vmatprep.subr.mxu0 0.0
    %820 = vmatpush1.msra.mxu0 0.0
    %821 = vmatprep.subr.mxu0 0.0
    %822 = vmatpush1.msra.mxu0 0.0
    %823 = vmatprep.subr.mxu0 0.0
    %824 = vmatpush1.msra.mxu0 0.0
    %825 = vmatprep.subr.mxu0 0.0
    %826 = vmatpush1.msra.mxu0 0.0
    %827 = vmatprep.subr.mxu0 0.0
    %828 = vmatpush1.msra.mxu0 0.0
    %829 = vmatprep.subr.mxu0 0.0
    %830 = vmatpush1.msra.mxu0 0.0
    %831 = vmatprep.subr.mxu0 0.0
    %832 = vmatpush1.msra.mxu0 0.0
    %833 = vmatprep.subr.mxu0 0.0
    %834 = vmatpush1.msra.mxu0 0.0
    %835 = vmatprep.subr.mxu0 0.0
    %836 = vmatpush1.msra.mxu0 0.0
    %837 = vmatprep.subr.mxu0 0.0
    %838 = vmatpush1.msra.mxu0 0.0
    %839 = vmatprep.subr.mxu0 0.0
    %840 = vmatpush1.msra.mxu0 0.0
    %841 = vmatprep.mubr.f32.mxu0 0.0
    %842 = vmatmul.mubr.f32.gmra.mrb[0].mxu0 %v681
    %v843 = vpop.f32.mrb[0].mxu0
    %v844 = vadd.f32 0.0, %v843
    %v845 = vpop.f32.mrb[0].mxu0
    %846 = vmatprep.mubr.f32.mxu0 0.0
    %847 = vmatmul.mubr.f32.gmra.mrb[0].mxu0 %v684
    %v848 = vpop.f32.mrb[0].mxu0
    %v849 = vadd.f32 0.0, %v848
    %v850 = vpop.f32.mrb[0].mxu0
    %851 = vmatprep.mubr.f32.mxu0 0.0
    %852 = vmatmul.mubr.f32.gmra.mrb[0].mxu0 %v687
    %v853 = vpop.f32.mrb[0].mxu0
    %v854 = vadd.f32 0.0, %v853
    %v855 = vpop.f32.mrb[0].mxu0
    %856 = vmatprep.mubr.f32.mxu0 0.0
    %857 = vmatmul.mubr.f32.gmra.mrb[0].mxu0 %v690
    %v858 = vpop.f32.mrb[0].mxu0
    %v859 = vadd.f32 0.0, %v858
    %v860 = vpop.f32.mrb[0].mxu0
    %861 = vdwg.mxu0
    %862 = vmatprep.subr.mxu0 0.0
    %863 = vmatpush1.msra.mxu0 %v613
    %864 = vmatprep.subr.mxu0 0.0
    %865 = vmatpush1.msra.mxu0 %v669
    %866 = vmatprep.subr.mxu0 0.0
    %867 = vmatpush1.msra.mxu0 0.0
    %868 = vmatprep.subr.mxu0 0.0
    %869 = vmatpush1.msra.mxu0 0.0
    %870 = vmatprep.subr.mxu0 0.0
    %871 = vmatpush1.msra.mxu0 0.0
    %872 = vmatprep.subr.mxu0 0.0
    %873 = vmatpush1.msra.mxu0 0.0
    %874 = vmatprep.subr.mxu0 0.0
    %875 = vmatpush1.msra.mxu0 0.0
    %876 = vmatprep.subr.mxu0 0.0
    %877 = vmatpush1.msra.mxu0 0.0
    %878 = vmatprep.subr.mxu0 0.0
    %879 = vmatpush1.msra.mxu0 0.0
    %880 = vmatprep.subr.mxu0 0.0
    %881 = vmatpush1.msra.mxu0 0.0
    %882 = vmatprep.subr.mxu0 0.0
    %883 = vmatpush1.msra.mxu0 0.0
    %884 = vmatprep.subr.mxu0 0.0
    %885 = vmatpush1.msra.mxu0 0.0
    %886 = vmatprep.subr.mxu0 0.0
    %887 = vmatpush1.msra.mxu0 0.0
    %888 = vmatprep.subr.mxu0 0.0
    %889 = vmatpush1.msra.mxu0 0.0
    %890 = vmatprep.subr.mxu0 0.0
    %891 = vmatpush1.msra.mxu0 0.0
    %892 = vmatprep.subr.mxu0 0.0
    %893 = vmatpush1.msra.mxu0 0.0
    %894 = vmatprep.subr.mxu0 0.0
    %895 = vmatpush1.msra.mxu0 0.0
    %896 = vmatprep.subr.mxu0 0.0
    %897 = vmatpush1.msra.mxu0 0.0
    %898 = vmatprep.subr.mxu0 0.0
    %899 = vmatpush1.msra.mxu0 0.0
    %900 = vmatprep.subr.mxu0 0.0
    %901 = vmatpush1.msra.mxu0 0.0
    %902 = vmatprep.subr.mxu0 0.0
    %903 = vmatpush1.msra.mxu0 0.0
    %904 = vmatprep.subr.mxu0 0.0
    %905 = vmatpush1.msra.mxu0 0.0
    %906 = vmatprep.subr.mxu0 0.0
    %907 = vmatpush1.msra.mxu0 0.0
    %908 = vmatprep.subr.mxu0 0.0
    %909 = vmatpush1.msra.mxu0 0.0
    %910 = vmatprep.subr.mxu0 0.0
    %911 = vmatpush1.msra.mxu0 0.0
    %912 = vmatprep.subr.mxu0 0.0
    %913 = vmatpush1.msra.mxu0 0.0
    %914 = vmatprep.subr.mxu0 0.0
    %915 = vmatpush1.msra.mxu0 0.0
    %916 = vmatprep.subr.mxu0 0.0
    %917 = vmatpush1.msra.mxu0 0.0
    %918 = vmatprep.subr.mxu0 0.0
    %919 = vmatpush1.msra.mxu0 0.0
    %920 = vmatprep.subr.mxu0 0.0
    %921 = vmatpush1.msra.mxu0 0.0
    %922 = vmatprep.subr.mxu0 0.0
    %923 = vmatpush1.msra.mxu0 0.0
    %924 = vmatprep.subr.mxu0 0.0
    %925 = vmatpush1.msra.mxu0 0.0
    %926 = vmatprep.mubr.f32.mxu0 0.0
    %927 = vmatmul.mubr.f32.gmra.mrb[0].mxu0 %v681
    %v928 = vpop.f32.mrb[0].mxu0
    %v929 = vadd.f32 0.0, %v928
    %v930 = vpop.f32.mrb[0].mxu0
    %931 = vmatprep.mubr.f32.mxu0 0.0
    %932 = vmatmul.mubr.f32.gmra.mrb[0].mxu0 %v684
    %v933 = vpop.f32.mrb[0].mxu0
    %v934 = vadd.f32 0.0, %v933
    %v935 = vpop.f32.mrb[0].mxu0
    %936 = vmatprep.mubr.f32.mxu0 0.0
    %937 = vmatmul.mubr.f32.gmra.mrb[0].mxu0 %v687
    %v938 = vpop.f32.mrb[0].mxu0
    %v939 = vadd.f32 0.0, %v938
    %v940 = vpop.f32.mrb[0].mxu0
    %941 = vmatprep.mubr.f32.mxu0 0.0
    %942 = vmatmul.mubr.f32.gmra.mrb[0].mxu0 %v690
    %v943 = vpop.f32.mrb[0].mxu0
    %v944 = vadd.f32 0.0, %v943
    %v945 = vpop.f32.mrb[0].mxu0
    %946 = vdwg.mxu0
    %947 = vmatprep.subr.mxu0 0.0
    %948 = vmatpush1.msra.mxu0 %v614
    %949 = vmatprep.subr.mxu0 0.0
    %950 = vmatpush1.msra.mxu0 %v670
    %951 = vmatprep.subr.mxu0 0.0
    %952 = vmatpush1.msra.mxu0 0.0
    %953 = vmatprep.subr.mxu0 0.0
    %954 = vmatpush1.msra.mxu0 0.0
    %955 = vmatprep.subr.mxu0 0.0
    %956 = vmatpush1.msra.mxu0 0.0
    %957 = vmatprep.subr.mxu0 0.0
    %958 = vmatpush1.msra.mxu0 0.0
    %959 = vmatprep.subr.mxu0 0.0
    %960 = vmatpush1.msra.mxu0 0.0
    %961 = vmatprep.subr.mxu0 0.0
    %962 = vmatpush1.msra.mxu0 0.0
    %963 = vmatprep.subr.mxu0 0.0
    %964 = vmatpush1.msra.mxu0 0.0
    %965 = vmatprep.subr.mxu0 0.0
    %966 = vmatpush1.msra.mxu0 0.0
    %967 = vmatprep.subr.mxu0 0.0
    %968 = vmatpush1.msra.mxu0 0.0
    %969 = vmatprep.subr.mxu0 0.0
    %970 = vmatpush1.msra.mxu0 0.0
    %971 = vmatprep.subr.mxu0 0.0
    %972 = vmatpush1.msra.mxu0 0.0
    %973 = vmatprep.subr.mxu0 0.0
    %974 = vmatpush1.msra.mxu0 0.0
    %975 = vmatprep.subr.mxu0 0.0
    %976 = vmatpush1.msra.mxu0 0.0
    %977 = vmatprep.subr.mxu0 0.0
    %978 = vmatpush1.msra.mxu0 0.0
    %979 = vmatprep.subr.mxu0 0.0
    %980 = vmatpush1.msra.mxu0 0.0
    %981 = vmatprep.subr.mxu0 0.0
    %982 = vmatpush1.msra.mxu0 0.0
    %983 = vmatprep.subr.mxu0 0.0
    %984 = vmatpush1.msra.mxu0 0.0
    %985 = vmatprep.subr.mxu0 0.0
    %986 = vmatpush1.msra.mxu0 0.0
    %987 = vmatprep.subr.mxu0 0.0
    %988 = vmatpush1.msra.mxu0 0.0
    %989 = vmatprep.subr.mxu0 0.0
    %990 = vmatpush1.msra.mxu0 0.0
    %991 = vmatprep.subr.mxu0 0.0
    %992 = vmatpush1.msra.mxu0 0.0
    %993 = vmatprep.subr.mxu0 0.0
    %994 = vmatpush1.msra.mxu0 0.0
    %995 = vmatprep.subr.mxu0 0.0
    %996 = vmatpush1.msra.mxu0 0.0
    %997 = vmatprep.subr.mxu0 0.0
    %998 = vmatpush1.msra.mxu0 0.0
    %999 = vmatprep.subr.mxu0 0.0
    %1000 = vmatpush1.msra.mxu0 0.0
    %1001 = vmatprep.subr.mxu0 0.0
    %1002 = vmatpush1.msra.mxu0 0.0
    %1003 = vmatprep.subr.mxu0 0.0
    %1004 = vmatpush1.msra.mxu0 0.0
    %1005 = vmatprep.subr.mxu0 0.0
    %1006 = vmatpush1.msra.mxu0 0.0
    %1007 = vmatprep.subr.mxu0 0.0
    %1008 = vmatpush1.msra.mxu0 0.0
    %1009 = vmatprep.subr.mxu0 0.0
    %1010 = vmatpush1.msra.mxu0 0.0
    %1011 = vmatprep.mubr.f32.mxu0 0.0
    %1012 = vmatmul.mubr.f32.gmra.mrb[0].mxu0 %v681
    %v1013 = vpop.f32.mrb[0].mxu0
    %v1014 = vadd.f32 0.0, %v1013
    %v1015 = vpop.f32.mrb[0].mxu0
    %1016 = vmatprep.mubr.f32.mxu0 0.0
    %1017 = vmatmul.mubr.f32.gmra.mrb[0].mxu0 %v684
    %v1018 = vpop.f32.mrb[0].mxu0
    %v1019 = vadd.f32 0.0, %v1018
    %v1020 = vpop.f32.mrb[0].mxu0
    %1021 = vmatprep.mubr.f32.mxu0 0.0
    %1022 = vmatmul.mubr.f32.gmra.mrb[0].mxu0 %v687
    %v1023 = vpop.f32.mrb[0].mxu0
    %v1024 = vadd.f32 0.0, %v1023
    %v1025 = vpop.f32.mrb[0].mxu0
    %1026 = vmatprep.mubr.f32.mxu0 0.0
    %1027 = vmatmul.mubr.f32.gmra.mrb[0].mxu0 %v690
    %v1028 = vpop.f32.mrb[0].mxu0
    %v1029 = vadd.f32 0.0, %v1028
    %v1030 = vpop.f32.mrb[0].mxu0
    %1031 = vdwg.mxu0
    %1032 = vmatprep.subr.mxu0 0.0
    %1033 = vmatpush1.msra.mxu0 %v615
    %1034 = vmatprep.subr.mxu0 0.0
    %1035 = vmatpush1.msra.mxu0 %v671
    %1036 = vmatprep.subr.mxu0 0.0
    %1037 = vmatpush1.msra.mxu0 0.0
    %1038 = vmatprep.subr.mxu0 0.0
    %1039 = vmatpush1.msra.mxu0 0.0
    %1040 = vmatprep.subr.mxu0 0.0
    %1041 = vmatpush1.msra.mxu0 0.0
    %1042 = vmatprep.subr.mxu0 0.0
    %1043 = vmatpush1.msra.mxu0 0.0
    %1044 = vmatprep.subr.mxu0 0.0
    %1045 = vmatpush1.msra.mxu0 0.0
    %1046 = vmatprep.subr.mxu0 0.0
    %1047 = vmatpush1.msra.mxu0 0.0
    %1048 = vmatprep.subr.mxu0 0.0
    %1049 = vmatpush1.msra.mxu0 0.0
    %1050 = vmatprep.subr.mxu0 0.0
    %1051 = vmatpush1.msra.mxu0 0.0
    %1052 = vmatprep.subr.mxu0 0.0
    %1053 = vmatpush1.msra.mxu0 0.0
    %1054 = vmatprep.subr.mxu0 0.0
    %1055 = vmatpush1.msra.mxu0 0.0
    %1056 = vmatprep.subr.mxu0 0.0
    %1057 = vmatpush1.msra.mxu0 0.0
    %1058 = vmatprep.subr.mxu0 0.0
    %1059 = vmatpush1.msra.mxu0 0.0
    %1060 = vmatprep.subr.mxu0 0.0
    %1061 = vmatpush1.msra.mxu0 0.0
    %1062 = vmatprep.subr.mxu0 0.0
    %1063 = vmatpush1.msra.mxu0 0.0
    %1064 = vmatprep.subr.mxu0 0.0
    %1065 = vmatpush1.msra.mxu0 0.0
    %1066 = vmatprep.subr.mxu0 0.0
    %1067 = vmatpush1.msra.mxu0 0.0
    %1068 = vmatprep.subr.mxu0 0.0
    %1069 = vmatpush1.msra.mxu0 0.0
    %1070 = vmatprep.subr.mxu0 0.0
    %1071 = vmatpush1.msra.mxu0 0.0
    %1072 = vmatprep.subr.mxu0 0.0
    %1073 = vmatpush1.msra.mxu0 0.0
    %1074 = vmatprep.subr.mxu0 0.0
    %1075 = vmatpush1.msra.mxu0 0.0
    %1076 = vmatprep.subr.mxu0 0.0
    %1077 = vmatpush1.msra.mxu0 0.0
    %1078 = vmatprep.subr.mxu0 0.0
    %1079 = vmatpush1.msra.mxu0 0.0
    %1080 = vmatprep.subr.mxu0 0.0
    %1081 = vmatpush1.msra.mxu0 0.0
    %1082 = vmatprep.subr.mxu0 0.0
    %1083 = vmatpush1.msra.mxu0 0.0
    %1084 = vmatprep.subr.mxu0 0.0
    %1085 = vmatpush1.msra.mxu0 0.0
    %1086 = vmatprep.subr.mxu0 0.0
    %1087 = vmatpush1.msra.mxu0 0.0
    %1088 = vmatprep.subr.mxu0 0.0
    %1089 = vmatpush1.msra.mxu0 0.0
    %1090 = vmatprep.subr.mxu0 0.0
    %1091 = vmatpush1.msra.mxu0 0.0
    %1092 = vmatprep.subr.mxu0 0.0
    %1093 = vmatpush1.msra.mxu0 0.0
    %1094 = vmatprep.subr.mxu0 0.0
    %1095 = vmatpush1.msra.mxu0 0.0
    %1096 = vmatprep.mubr.f32.mxu0 0.0
    %1097 = vmatmul.mubr.f32.gmra.mrb[0].mxu0 %v681
    %v1098 = vpop.f32.mrb[0].mxu0
    %v1099 = vadd.f32 0.0, %v1098
    %v1100 = vpop.f32.mrb[0].mxu0
    %1101 = vmatprep.mubr.f32.mxu0 0.0
    %1102 = vmatmul.mubr.f32.gmra.mrb[0].mxu0 %v684
    %v1103 = vpop.f32.mrb[0].mxu0
    %v1104 = vadd.f32 0.0, %v1103
    %v1105 = vpop.f32.mrb[0].mxu0
    %1106 = vmatprep.mubr.f32.mxu0 0.0
    %1107 = vmatmul.mubr.f32.gmra.mrb[0].mxu0 %v687
    %v1108 = vpop.f32.mrb[0].mxu0
    %v1109 = vadd.f32 0.0, %v1108
    %v1110 = vpop.f32.mrb[0].mxu0
    %1111 = vmatprep.mubr.f32.mxu0 0.0
    %1112 = vmatmul.mubr.f32.gmra.mrb[0].mxu0 %v690
    %v1113 = vpop.f32.mrb[0].mxu0
    %v1114 = vadd.f32 0.0, %v1113
    %v1115 = vpop.f32.mrb[0].mxu0
    %1116 = vdwg.mxu0
    %1117 = vmatprep.subr.mxu0 0.0
    %1118 = vmatpush1.msra.mxu0 %v616
    %1119 = vmatprep.subr.mxu0 0.0
    %1120 = vmatpush1.msra.mxu0 %v672
    %1121 = vmatprep.subr.mxu0 0.0
    %1122 = vmatpush1.msra.mxu0 0.0
    %1123 = vmatprep.subr.mxu0 0.0
    %1124 = vmatpush1.msra.mxu0 0.0
    %1125 = vmatprep.subr.mxu0 0.0
    %1126 = vmatpush1.msra.mxu0 0.0
    %1127 = vmatprep.subr.mxu0 0.0
    %1128 = vmatpush1.msra.mxu0 0.0
    %1129 = vmatprep.subr.mxu0 0.0
    %1130 = vmatpush1.msra.mxu0 0.0
    %1131 = vmatprep.subr.mxu0 0.0
    %1132 = vmatpush1.msra.mxu0 0.0
    %1133 = vmatprep.subr.mxu0 0.0
    %1134 = vmatpush1.msra.mxu0 0.0
    %1135 = vmatprep.subr.mxu0 0.0
    %1136 = vmatpush1.msra.mxu0 0.0
    %1137 = vmatprep.subr.mxu0 0.0
    %1138 = vmatpush1.msra.mxu0 0.0
    %1139 = vmatprep.subr.mxu0 0.0
    %1140 = vmatpush1.msra.mxu0 0.0
    %1141 = vmatprep.subr.mxu0 0.0
    %1142 = vmatpush1.msra.mxu0 0.0
    %1143 = vmatprep.subr.mxu0 0.0
    %1144 = vmatpush1.msra.mxu0 0.0
    %1145 = vmatprep.subr.mxu0 0.0
    %1146 = vmatpush1.msra.mxu0 0.0
    %1147 = vmatprep.subr.mxu0 0.0
    %1148 = vmatpush1.msra.mxu0 0.0
    %1149 = vmatprep.subr.mxu0 0.0
    %1150 = vmatpush1.msra.mxu0 0.0
    %1151 = vmatprep.subr.mxu0 0.0
    %1152 = vmatpush1.msra.mxu0 0.0
    %1153 = vmatprep.subr.mxu0 0.0
    %1154 = vmatpush1.msra.mxu0 0.0
    %1155 = vmatprep.subr.mxu0 0.0
    %1156 = vmatpush1.msra.mxu0 0.0
    %1157 = vmatprep.subr.mxu0 0.0
    %1158 = vmatpush1.msra.mxu0 0.0
    %1159 = vmatprep.subr.mxu0 0.0
    %1160 = vmatpush1.msra.mxu0 0.0
    %1161 = vmatprep.subr.mxu0 0.0
    %1162 = vmatpush1.msra.mxu0 0.0
    %1163 = vmatprep.subr.mxu0 0.0
    %1164 = vmatpush1.msra.mxu0 0.0
    %1165 = vmatprep.subr.mxu0 0.0
    %1166 = vmatpush1.msra.mxu0 0.0
    %1167 = vmatprep.subr.mxu0 0.0
    %1168 = vmatpush1.msra.mxu0 0.0
    %1169 = vmatprep.subr.mxu0 0.0
    %1170 = vmatpush1.msra.mxu0 0.0
    %1171 = vmatprep.subr.mxu0 0.0
    %1172 = vmatpush1.msra.mxu0 0.0
    %1173 = vmatprep.subr.mxu0 0.0
    %1174 = vmatpush1.msra.mxu0 0.0
    %1175 = vmatprep.subr.mxu0 0.0
    %1176 = vmatpush1.msra.mxu0 0.0
    %1177 = vmatprep.subr.mxu0 0.0
    %1178 = vmatpush1.msra.mxu0 0.0
    %1179 = vmatprep.subr.mxu0 0.0
    %1180 = vmatpush1.msra.mxu0 0.0
    %1181 = vmatprep.mubr.f32.mxu0 0.0
    %1182 = vmatmul.mubr.f32.gmra.mrb[0].mxu0 %v681
    %v1183 = vpop.f32.mrb[0].mxu0
    %v1184 = vadd.f32 0.0, %v1183
    %v1185 = vpop.f32.mrb[0].mxu0
    %1186 = vmatprep.mubr.f32.mxu0 0.0
    %1187 = vmatmul.mubr.f32.gmra.mrb[0].mxu0 %v684
    %v1188 = vpop.f32.mrb[0].mxu0
    %v1189 = vadd.f32 0.0, %v1188
    %v1190 = vpop.f32.mrb[0].mxu0
    %1191 = vmatprep.mubr.f32.mxu0 0.0
    %1192 = vmatmul.mubr.f32.gmra.mrb[0].mxu0 %v687
    %v1193 = vpop.f32.mrb[0].mxu0
    %v1194 = vadd.f32 0.0, %v1193
    %v1195 = vpop.f32.mrb[0].mxu0
    %1196 = vmatprep.mubr.f32.mxu0 0.0
    %1197 = vmatmul.mubr.f32.gmra.mrb[0].mxu0 %v690
    %v1198 = vpop.f32.mrb[0].mxu0
    %v1199 = vadd.f32 0.0, %v1198
    %v1200 = vpop.f32.mrb[0].mxu0
    %1201 = vdwg.mxu0
    %1202 = vmatprep.subr.mxu0 0.0
    %1203 = vmatpush1.msra.mxu0 %v617
    %1204 = vmatprep.subr.mxu0 0.0
    %1205 = vmatpush1.msra.mxu0 %v673
    %1206 = vmatprep.subr.mxu0 0.0
    %1207 = vmatpush1.msra.mxu0 0.0
    %1208 = vmatprep.subr.mxu0 0.0
    %1209 = vmatpush1.msra.mxu0 0.0
    %1210 = vmatprep.subr.mxu0 0.0
    %1211 = vmatpush1.msra.mxu0 0.0
    %1212 = vmatprep.subr.mxu0 0.0
    %1213 = vmatpush1.msra.mxu0 0.0
    %1214 = vmatprep.subr.mxu0 0.0
    %1215 = vmatpush1.msra.mxu0 0.0
    %1216 = vmatprep.subr.mxu0 0.0
    %1217 = vmatpush1.msra.mxu0 0.0
    %1218 = vmatprep.subr.mxu0 0.0
    %1219 = vmatpush1.msra.mxu0 0.0
    %1220 = vmatprep.subr.mxu0 0.0
    %1221 = vmatpush1.msra.mxu0 0.0
    %1222 = vmatprep.subr.mxu0 0.0
    %1223 = vmatpush1.msra.mxu0 0.0
    %1224 = vmatprep.subr.mxu0 0.0
    %1225 = vmatpush1.msra.mxu0 0.0
    %1226 = vmatprep.subr.mxu0 0.0
    %1227 = vmatpush1.msra.mxu0 0.0
    %1228 = vmatprep.subr.mxu0 0.0
    %1229 = vmatpush1.msra.mxu0 0.0
    %1230 = vmatprep.subr.mxu0 0.0
    %1231 = vmatpush1.msra.mxu0 0.0
    %1232 = vmatprep.subr.mxu0 0.0
    %1233 = vmatpush1.msra.mxu0 0.0
    %1234 = vmatprep.subr.mxu0 0.0
    %1235 = vmatpush1.msra.mxu0 0.0
    %1236 = vmatprep.subr.mxu0 0.0
    %1237 = vmatpush1.msra.mxu0 0.0
    %1238 = vmatprep.subr.mxu0 0.0
    %1239 = vmatpush1.msra.mxu0 0.0
    %1240 = vmatprep.subr.mxu0 0.0
    %1241 = vmatpush1.msra.mxu0 0.0
    %1242 = vmatprep.subr.mxu0 0.0
    %1243 = vmatpush1.msra.mxu0 0.0
    %1244 = vmatprep.subr.mxu0 0.0
    %1245 = vmatpush1.msra.mxu0 0.0
    %1246 = vmatprep.subr.mxu0 0.0
    %1247 = vmatpush1.msra.mxu0 0.0
    %1248 = vmatprep.subr.mxu0 0.0
    %1249 = vmatpush1.msra.mxu0 0.0
    %1250 = vmatprep.subr.mxu0 0.0
    %1251 = vmatpush1.msra.mxu0 0.0
    %1252 = vmatprep.subr.mxu0 0.0
    %1253 = vmatpush1.msra.mxu0 0.0
    %1254 = vmatprep.subr.mxu0 0.0
    %1255 = vmatpush1.msra.mxu0 0.0
    %1256 = vmatprep.subr.mxu0 0.0
    %1257 = vmatpush1.msra.mxu0 0.0
    %1258 = vmatprep.subr.mxu0 0.0
    %1259 = vmatpush1.msra.mxu0 0.0
    %1260 = vmatprep.subr.mxu0 0.0
    %1261 = vmatpush1.msra.mxu0 0.0
    %1262 = vmatprep.subr.mxu0 0.0
    %1263 = vmatpush1.msra.mxu0 0.0
    %1264 = vmatprep.subr.mxu0 0.0
    %1265 = vmatpush1.msra.mxu0 0.0
    %1266 = vmatprep.mubr.f32.mxu0 0.0
    %1267 = vmatmul.mubr.f32.gmra.mrb[0].mxu0 %v681
    %v1268 = vpop.f32.mrb[0].mxu0
    %v1269 = vadd.f32 0.0, %v1268
    %v1270 = vpop.f32.mrb[0].mxu0
    %1271 = vmatprep.mubr.f32.mxu0 0.0
    %1272 = vmatmul.mubr.f32.gmra.mrb[0].mxu0 %v684
    %v1273 = vpop.f32.mrb[0].mxu0
    %v1274 = vadd.f32 0.0, %v1273
    %v1275 = vpop.f32.mrb[0].mxu0
    %1276 = vmatprep.mubr.f32.mxu0 0.0
    %1277 = vmatmul.mubr.f32.gmra.mrb[0].mxu0 %v687
    %v1278 = vpop.f32.mrb[0].mxu0
    %v1279 = vadd.f32 0.0, %v1278
    %v1280 = vpop.f32.mrb[0].mxu0
    %1281 = vmatprep.mubr.f32.mxu0 0.0
    %1282 = vmatmul.mubr.f32.gmra.mrb[0].mxu0 %v690
    %v1283 = vpop.f32.mrb[0].mxu0
    %v1284 = vadd.f32 0.0, %v1283
    %v1285 = vpop.f32.mrb[0].mxu0
    %1286 = vdwg.mxu0
    %1287 = vmatprep.subr.mxu0 0.0
    %1288 = vmatpush1.msra.mxu0 %v618
    %1289 = vmatprep.subr.mxu0 0.0
    %1290 = vmatpush1.msra.mxu0 %v674
    %1291 = vmatprep.subr.mxu0 0.0
    %1292 = vmatpush1.msra.mxu0 0.0
    %1293 = vmatprep.subr.mxu0 0.0
    %1294 = vmatpush1.msra.mxu0 0.0
    %1295 = vmatprep.subr.mxu0 0.0
    %1296 = vmatpush1.msra.mxu0 0.0
    %1297 = vmatprep.subr.mxu0 0.0
    %1298 = vmatpush1.msra.mxu0 0.0
    %1299 = vmatprep.subr.mxu0 0.0
    %1300 = vmatpush1.msra.mxu0 0.0
    %1301 = vmatprep.subr.mxu0 0.0
    %1302 = vmatpush1.msra.mxu0 0.0
    %1303 = vmatprep.subr.mxu0 0.0
    %1304 = vmatpush1.msra.mxu0 0.0
    %1305 = vmatprep.subr.mxu0 0.0
    %1306 = vmatpush1.msra.mxu0 0.0
    %1307 = vmatprep.subr.mxu0 0.0
    %1308 = vmatpush1.msra.mxu0 0.0
    %1309 = vmatprep.subr.mxu0 0.0
    %1310 = vmatpush1.msra.mxu0 0.0
    %1311 = vmatprep.subr.mxu0 0.0
    %1312 = vmatpush1.msra.mxu0 0.0
    %1313 = vmatprep.subr.mxu0 0.0
    %1314 = vmatpush1.msra.mxu0 0.0
    %1315 = vmatprep.subr.mxu0 0.0
    %1316 = vmatpush1.msra.mxu0 0.0
    %1317 = vmatprep.subr.mxu0 0.0
    %1318 = vmatpush1.msra.mxu0 0.0
    %1319 = vmatprep.subr.mxu0 0.0
    %1320 = vmatpush1.msra.mxu0 0.0
    %1321 = vmatprep.subr.mxu0 0.0
    %1322 = vmatpush1.msra.mxu0 0.0
    %1323 = vmatprep.subr.mxu0 0.0
    %1324 = vmatpush1.msra.mxu0 0.0
    %1325 = vmatprep.subr.mxu0 0.0
    %1326 = vmatpush1.msra.mxu0 0.0
    %1327 = vmatprep.subr.mxu0 0.0
    %1328 = vmatpush1.msra.mxu0 0.0
    %1329 = vmatprep.subr.mxu0 0.0
    %1330 = vmatpush1.msra.mxu0 0.0
    %1331 = vmatprep.subr.mxu0 0.0
    %1332 = vmatpush1.msra.mxu0 0.0
    %1333 = vmatprep.subr.mxu0 0.0
    %1334 = vmatpush1.msra.mxu0 0.0
    %1335 = vmatprep.subr.mxu0 0.0
    %1336 = vmatpush1.msra.mxu0 0.0
    %1337 = vmatprep.subr.mxu0 0.0
    %1338 = vmatpush1.msra.mxu0 0.0
    %1339 = vmatprep.subr.mxu0 0.0
    %1340 = vmatpush1.msra.mxu0 0.0
    %1341 = vmatprep.subr.mxu0 0.0
    %1342 = vmatpush1.msra.mxu0 0.0
    %1343 = vmatprep.subr.mxu0 0.0
    %1344 = vmatpush1.msra.mxu0 0.0
    %1345 = vmatprep.subr.mxu0 0.0
    %1346 = vmatpush1.msra.mxu0 0.0
    %1347 = vmatprep.subr.mxu0 0.0
    %1348 = vmatpush1.msra.mxu0 0.0
    %1349 = vmatprep.subr.mxu0 0.0
    %1350 = vmatpush1.msra.mxu0 0.0
    %1351 = vmatprep.mubr.f32.mxu0 0.0
    %1352 = vmatmul.mubr.f32.gmra.mrb[0].mxu0 %v681
    %v1353 = vpop.f32.mrb[0].mxu0
    %v1354 = vadd.f32 0.0, %v1353
    %v1355 = vpop.f32.mrb[0].mxu0
    %1356 = vmatprep.mubr.f32.mxu0 0.0
    %1357 = vmatmul.mubr.f32.gmra.mrb[0].mxu0 %v684
    %v1358 = vpop.f32.mrb[0].mxu0
    %v1359 = vadd.f32 0.0, %v1358
    %v1360 = vpop.f32.mrb[0].mxu0
    %1361 = vmatprep.mubr.f32.mxu0 0.0
    %1362 = vmatmul.mubr.f32.gmra.mrb[0].mxu0 %v687
    %v1363 = vpop.f32.mrb[0].mxu0
    %v1364 = vadd.f32 0.0, %v1363
    %v1365 = vpop.f32.mrb[0].mxu0
    %1366 = vmatprep.mubr.f32.mxu0 0.0
    %1367 = vmatmul.mubr.f32.gmra.mrb[0].mxu0 %v690
    %v1368 = vpop.f32.mrb[0].mxu0
    %v1369 = vadd.f32 0.0, %v1368
    %v1370 = vpop.f32.mrb[0].mxu0
    %1371 = vdwg.mxu0
    %vm1372 = vcmask 138240
    %v1373 = vsel %vm1372, %v759, -inf
    %1374 = vmax.xlane.f32.xlu0 %v1373
    %v1375 = vpop.xlane.xlu0 %1374
    %v1376 = vsel %vm1372, %v764, -inf
    %1377 = vmax.xlane.f32.xlu0 %v1376
    %v1378 = vpop.xlane.xlu0 %1377
    %v1379 = vsel %vm1372, %v769, -inf
    %1380 = vmax.xlane.f32.xlu0 %v1379
    %v1381 = vpop.xlane.xlu0 %1380
    %v1382 = vsel %vm1372, %v774, -inf
    %1383 = vmax.xlane.f32.xlu0 %v1382
    %v1384 = vpop.xlane.xlu0 %1383
    %v1385 = vsel %vm1372, %v844, -inf
    %1386 = vmax.xlane.f32.xlu0 %v1385
    %v1387 = vpop.xlane.xlu0 %1386
    %v1388 = vsel %vm1372, %v849, -inf
    %1389 = vmax.xlane.f32.xlu0 %v1388
    %v1390 = vpop.xlane.xlu0 %1389
    %v1391 = vsel %vm1372, %v854, -inf
    %1392 = vmax.xlane.f32.xlu0 %v1391
    %v1393 = vpop.xlane.xlu0 %1392
    %v1394 = vsel %vm1372, %v859, -inf
    %1395 = vmax.xlane.f32.xlu0 %v1394
    %v1396 = vpop.xlane.xlu0 %1395
    %v1397 = vsel %vm1372, %v929, -inf
    %1398 = vmax.xlane.f32.xlu0 %v1397
    %v1399 = vpop.xlane.xlu0 %1398
    %v1400 = vsel %vm1372, %v934, -inf
    %1401 = vmax.xlane.f32.xlu0 %v1400
    %v1402 = vpop.xlane.xlu0 %1401
    %v1403 = vsel %vm1372, %v939, -inf
    %1404 = vmax.xlane.f32.xlu0 %v1403
    %v1405 = vpop.xlane.xlu0 %1404
    %v1406 = vsel %vm1372, %v944, -inf
    %1407 = vmax.xlane.f32.xlu0 %v1406
    %v1408 = vpop.xlane.xlu0 %1407
    %v1409 = vsel %vm1372, %v1014, -inf
    %1410 = vmax.xlane.f32.xlu0 %v1409
    %v1411 = vpop.xlane.xlu0 %1410
    %v1412 = vsel %vm1372, %v1019, -inf
    %1413 = vmax.xlane.f32.xlu0 %v1412
    %v1414 = vpop.xlane.xlu0 %1413
    %v1415 = vsel %vm1372, %v1024, -inf
    %1416 = vmax.xlane.f32.xlu0 %v1415
    %v1417 = vpop.xlane.xlu0 %1416
    %v1418 = vsel %vm1372, %v1029, -inf
    %1419 = vmax.xlane.f32.xlu0 %v1418
    %v1420 = vpop.xlane.xlu0 %1419
    %v1421 = vsel %vm1372, %v1099, -inf
    %1422 = vmax.xlane.f32.xlu0 %v1421
    %v1423 = vpop.xlane.xlu0 %1422
    %v1424 = vsel %vm1372, %v1104, -inf
    %1425 = vmax.xlane.f32.xlu0 %v1424
    %v1426 = vpop.xlane.xlu0 %1425
    %v1427 = vsel %vm1372, %v1109, -inf
    %1428 = vmax.xlane.f32.xlu0 %v1427
    %v1429 = vpop.xlane.xlu0 %1428
    %v1430 = vsel %vm1372, %v1114, -inf
    %1431 = vmax.xlane.f32.xlu0 %v1430
    %v1432 = vpop.xlane.xlu0 %1431
    %v1433 = vsel %vm1372, %v1184, -inf
    %1434 = vmax.xlane.f32.xlu0 %v1433
    %v1435 = vpop.xlane.xlu0 %1434
    %v1436 = vsel %vm1372, %v1189, -inf
    %1437 = vmax.xlane.f32.xlu0 %v1436
    %v1438 = vpop.xlane.xlu0 %1437
    %v1439 = vsel %vm1372, %v1194, -inf
    %1440 = vmax.xlane.f32.xlu0 %v1439
    %v1441 = vpop.xlane.xlu0 %1440
    %v1442 = vsel %vm1372, %v1199, -inf
    %1443 = vmax.xlane.f32.xlu0 %v1442
    %v1444 = vpop.xlane.xlu0 %1443
    %v1445 = vsel %vm1372, %v1269, -inf
    %1446 = vmax.xlane.f32.xlu0 %v1445
    %v1447 = vpop.xlane.xlu0 %1446
    %v1448 = vsel %vm1372, %v1274, -inf
    %1449 = vmax.xlane.f32.xlu0 %v1448
    %v1450 = vpop.xlane.xlu0 %1449
    %v1451 = vsel %vm1372, %v1279, -inf
    %1452 = vmax.xlane.f32.xlu0 %v1451
    %v1453 = vpop.xlane.xlu0 %1452
    %v1454 = vsel %vm1372, %v1284, -inf
    %1455 = vmax.xlane.f32.xlu0 %v1454
    %v1456 = vpop.xlane.xlu0 %1455
    %v1457 = vsel %vm1372, %v1354, -inf
    %1458 = vmax.xlane.f32.xlu0 %v1457
    %v1459 = vpop.xlane.xlu0 %1458
    %v1460 = vsel %vm1372, %v1359, -inf
    %1461 = vmax.xlane.f32.xlu0 %v1460
    %v1462 = vpop.xlane.xlu0 %1461
    %v1463 = vsel %vm1372, %v1364, -inf
    %1464 = vmax.xlane.f32.xlu0 %v1463
    %v1465 = vpop.xlane.xlu0 %1464
    %v1466 = vsel %vm1372, %v1369, -inf
    %1467 = vmax.xlane.f32.xlu0 %v1466
    %v1468 = vpop.xlane.xlu0 %1467
    %v1469 = vld [vmem:[%s4] sm:$0x1]
    %v1471 = vlaneseq
    %v1472 = vshrl.u32 %v1471, 7
    %v1473 = vsub.s32 0, %v1472
    %v1474 = vrot.slane %v1469, %v1473
    %1476 = vbcast.lane.b32.xlu0 %v1474, 256
    %v1477 = vpop.permute.xlu0 %1476
    %s1479 = sor.u32 256, 8
    %1480 = vbcast.lane.b32.xlu0 %v1474, %s1479
    %v1481 = vpop.permute.xlu0 %1480
    %s1483 = sor.u32 256, 16
    %1484 = vbcast.lane.b32.xlu0 %v1474, %s1483
    %v1485 = vpop.permute.xlu0 %1484
    %s1487 = sor.u32 256, 24
    %1488 = vbcast.lane.b32.xlu0 %v1474, %s1487
    %v1489 = vpop.permute.xlu0 %1488
    %v1494 = vadd.f32 %v1375, %v1477
    %v1495 = vadd.f32 %v1378, %v1481
    %v1496 = vadd.f32 %v1381, %v1485
    %v1497 = vadd.f32 %v1384, %v1489
    %v1498 = vadd.f32 %v1387, %v1477
    %v1499 = vadd.f32 %v1390, %v1481
    %v1500 = vadd.f32 %v1393, %v1485
    %v1501 = vadd.f32 %v1396, %v1489
    %v1502 = vadd.f32 %v1399, %v1477
    %v1503 = vadd.f32 %v1402, %v1481
    %v1504 = vadd.f32 %v1405, %v1485
    %v1505 = vadd.f32 %v1408, %v1489
    %v1506 = vadd.f32 %v1411, %v1477
    %v1507 = vadd.f32 %v1414, %v1481
    %v1508 = vadd.f32 %v1417, %v1485
    %v1509 = vadd.f32 %v1420, %v1489
    %v1510 = vadd.f32 %v1423, %v1477
    %v1511 = vadd.f32 %v1426, %v1481
    %v1512 = vadd.f32 %v1429, %v1485
    %v1513 = vadd.f32 %v1432, %v1489
    %v1514 = vadd.f32 %v1435, %v1477
    %v1515 = vadd.f32 %v1438, %v1481
    %v1516 = vadd.f32 %v1441, %v1485
    %v1517 = vadd.f32 %v1444, %v1489
    %v1518 = vadd.f32 %v1447, %v1477
    %v1519 = vadd.f32 %v1450, %v1481
    %v1520 = vadd.f32 %v1453, %v1485
    %v1521 = vadd.f32 %v1456, %v1489
    %v1522 = vadd.f32 %v1459, %v1477
    %v1523 = vadd.f32 %v1462, %v1481
    %v1524 = vadd.f32 %v1465, %v1485
    %v1525 = vadd.f32 %v1468, %v1489
    %v1527 = vlaneseq
    %v1528 = vshrl.u32 %v1527, 7
    %v1529 = vsub.s32 0, %v1528
    %v1530 = vrot.slane %v104, %v1529
    %1532 = vbcast.lane.b32.xlu0 %v1530, 256
    %v1533 = vpop.permute.xlu0 %1532
    %s1535 = sor.u32 256, 8
    %1536 = vbcast.lane.b32.xlu0 %v1530, %s1535
    %v1537 = vpop.permute.xlu0 %1536
    %s1539 = sor.u32 256, 16
    %1540 = vbcast.lane.b32.xlu0 %v1530, %s1539
    %v1541 = vpop.permute.xlu0 %1540
    %s1543 = sor.u32 256, 24
    %1544 = vbcast.lane.b32.xlu0 %v1530, %s1543
    %v1545 = vpop.permute.xlu0 %1544
    %v1546 = vlaneseq
    %v1547 = vshrl.u32 %v1546, 7
    %v1548 = vsub.s32 1, %v1547
    %v1549 = vrot.slane %v104, %v1548
    %1551 = vbcast.lane.b32.xlu0 %v1549, 256
    %v1552 = vpop.permute.xlu0 %1551
    %s1554 = sor.u32 256, 8
    %1555 = vbcast.lane.b32.xlu0 %v1549, %s1554
    %v1556 = vpop.permute.xlu0 %1555
    %s1558 = sor.u32 256, 16
    %1559 = vbcast.lane.b32.xlu0 %v1549, %s1558
    %v1560 = vpop.permute.xlu0 %1559
    %s1562 = sor.u32 256, 24
    %1563 = vbcast.lane.b32.xlu0 %v1549, %s1562
    %v1564 = vpop.permute.xlu0 %1563
    %v1565 = vlaneseq
    %v1566 = vshrl.u32 %v1565, 7
    %v1567 = vsub.s32 2, %v1566
    %v1568 = vrot.slane %v104, %v1567
    %1570 = vbcast.lane.b32.xlu0 %v1568, 256
    %v1571 = vpop.permute.xlu0 %1570
    %s1573 = sor.u32 256, 8
    %1574 = vbcast.lane.b32.xlu0 %v1568, %s1573
    %v1575 = vpop.permute.xlu0 %1574
    %s1577 = sor.u32 256, 16
    %1578 = vbcast.lane.b32.xlu0 %v1568, %s1577
    %v1579 = vpop.permute.xlu0 %1578
    %s1581 = sor.u32 256, 24
    %1582 = vbcast.lane.b32.xlu0 %v1568, %s1581
    %v1583 = vpop.permute.xlu0 %1582
    %v1584 = vlaneseq
    %v1585 = vshrl.u32 %v1584, 7
    %v1586 = vsub.s32 3, %v1585
    %v1587 = vrot.slane %v104, %v1586
    %1589 = vbcast.lane.b32.xlu0 %v1587, 256
    %v1590 = vpop.permute.xlu0 %1589
    %s1592 = sor.u32 256, 8
    %1593 = vbcast.lane.b32.xlu0 %v1587, %s1592
    %v1594 = vpop.permute.xlu0 %1593
    %s1596 = sor.u32 256, 16
    %1597 = vbcast.lane.b32.xlu0 %v1587, %s1596
    %v1598 = vpop.permute.xlu0 %1597
    %s1600 = sor.u32 256, 24
    %1601 = vbcast.lane.b32.xlu0 %v1587, %s1600
    %v1602 = vpop.permute.xlu0 %1601
    %v1603 = vlaneseq
    %v1604 = vshrl.u32 %v1603, 7
    %v1605 = vsub.s32 4, %v1604
    %v1606 = vrot.slane %v104, %v1605
    %1608 = vbcast.lane.b32.xlu0 %v1606, 256
    %v1609 = vpop.permute.xlu0 %1608
    %s1611 = sor.u32 256, 8
    %1612 = vbcast.lane.b32.xlu0 %v1606, %s1611
    %v1613 = vpop.permute.xlu0 %1612
    %s1615 = sor.u32 256, 16
    %1616 = vbcast.lane.b32.xlu0 %v1606, %s1615
    %v1617 = vpop.permute.xlu0 %1616
    %s1619 = sor.u32 256, 24
    %1620 = vbcast.lane.b32.xlu0 %v1606, %s1619
    %v1621 = vpop.permute.xlu0 %1620
    %v1622 = vlaneseq
    %v1623 = vshrl.u32 %v1622, 7
    %v1624 = vsub.s32 5, %v1623
    %v1625 = vrot.slane %v104, %v1624
    %1627 = vbcast.lane.b32.xlu0 %v1625, 256
    %v1628 = vpop.permute.xlu0 %1627
    %s1630 = sor.u32 256, 8
    %1631 = vbcast.lane.b32.xlu0 %v1625, %s1630
    %v1632 = vpop.permute.xlu0 %1631
    %s1634 = sor.u32 256, 16
    %1635 = vbcast.lane.b32.xlu0 %v1625, %s1634
    %v1636 = vpop.permute.xlu0 %1635
    %s1638 = sor.u32 256, 24
    %1639 = vbcast.lane.b32.xlu0 %v1625, %s1638
    %v1640 = vpop.permute.xlu0 %1639
    %v1641 = vlaneseq
    %v1642 = vshrl.u32 %v1641, 7
    %v1643 = vsub.s32 6, %v1642
    %v1644 = vrot.slane %v104, %v1643
    %1646 = vbcast.lane.b32.xlu0 %v1644, 256
    %v1647 = vpop.permute.xlu0 %1646
    %s1649 = sor.u32 256, 8
    %1650 = vbcast.lane.b32.xlu0 %v1644, %s1649
    %v1651 = vpop.permute.xlu0 %1650
    %s1653 = sor.u32 256, 16
    %1654 = vbcast.lane.b32.xlu0 %v1644, %s1653
    %v1655 = vpop.permute.xlu0 %1654
    %s1657 = sor.u32 256, 24
    %1658 = vbcast.lane.b32.xlu0 %v1644, %s1657
    %v1659 = vpop.permute.xlu0 %1658
    %v1660 = vlaneseq
    %v1661 = vshrl.u32 %v1660, 7
    %v1662 = vsub.s32 7, %v1661
    %v1663 = vrot.slane %v104, %v1662
    %1665 = vbcast.lane.b32.xlu0 %v1663, 256
    %v1666 = vpop.permute.xlu0 %1665
    %s1668 = sor.u32 256, 8
    %1669 = vbcast.lane.b32.xlu0 %v1663, %s1668
    %v1670 = vpop.permute.xlu0 %1669
    %s1672 = sor.u32 256, 16
    %1673 = vbcast.lane.b32.xlu0 %v1663, %s1672
    %v1674 = vpop.permute.xlu0 %1673
    %s1676 = sor.u32 256, 24
    %1677 = vbcast.lane.b32.xlu0 %v1663, %s1676
    %v1678 = vpop.permute.xlu0 %1677
    %v1711 = vmul.f32 %v1494, %v1533
    %v1712 = vmul.f32 %v1495, %v1537
    %v1713 = vmul.f32 %v1496, %v1541
    %v1714 = vmul.f32 %v1497, %v1545
    %v1715 = vmul.f32 %v1498, %v1552
    %v1716 = vmul.f32 %v1499, %v1556
    %v1717 = vmul.f32 %v1500, %v1560
    %v1718 = vmul.f32 %v1501, %v1564
    %v1719 = vmul.f32 %v1502, %v1571
    %v1720 = vmul.f32 %v1503, %v1575
    %v1721 = vmul.f32 %v1504, %v1579
    %v1722 = vmul.f32 %v1505, %v1583
    %v1723 = vmul.f32 %v1506, %v1590
    %v1724 = vmul.f32 %v1507, %v1594
    %v1725 = vmul.f32 %v1508, %v1598
    %v1726 = vmul.f32 %v1509, %v1602
    %v1727 = vmul.f32 %v1510, %v1609
    %v1728 = vmul.f32 %v1511, %v1613
    %v1729 = vmul.f32 %v1512, %v1617
    %v1730 = vmul.f32 %v1513, %v1621
    %v1731 = vmul.f32 %v1514, %v1628
    %v1732 = vmul.f32 %v1515, %v1632
    %v1733 = vmul.f32 %v1516, %v1636
    %v1734 = vmul.f32 %v1517, %v1640
    %v1735 = vmul.f32 %v1518, %v1647
    %v1736 = vmul.f32 %v1519, %v1651
    %v1737 = vmul.f32 %v1520, %v1655
    %v1738 = vmul.f32 %v1521, %v1659
    %v1739 = vmul.f32 %v1522, %v1666
    %v1740 = vmul.f32 %v1523, %v1670
    %v1741 = vmul.f32 %v1524, %v1674
    %v1742 = vmul.f32 %v1525, %v1678
    %1775 = vset.pattern.permute.xlu0 0
    %1776 = vperm.xlu0 %1775, %v1711
    %v1777 = vpop.permute.xlu0 %1776
    %1778 = vset.pattern.permute.xlu0 0
    %1779 = vperm.xlu0 %1778, %v1712
    %v1780 = vpop.permute.xlu0 %1779
    %1781 = vset.pattern.permute.xlu0 0
    %1782 = vperm.xlu0 %1781, %v1713
    %v1783 = vpop.permute.xlu0 %1782
    %1784 = vset.pattern.permute.xlu0 0
    %1785 = vperm.xlu0 %1784, %v1714
    %v1786 = vpop.permute.xlu0 %1785
    %1787 = vset.pattern.permute.xlu0 0
    %1788 = vperm.xlu0 %1787, %v1715
    %v1789 = vpop.permute.xlu0 %1788
    %1790 = vset.pattern.permute.xlu0 0
    %1791 = vperm.xlu0 %1790, %v1716
    %v1792 = vpop.permute.xlu0 %1791
    %1793 = vset.pattern.permute.xlu0 0
    %1794 = vperm.xlu0 %1793, %v1717
    %v1795 = vpop.permute.xlu0 %1794
    %1796 = vset.pattern.permute.xlu0 0
    %1797 = vperm.xlu0 %1796, %v1718
    %v1798 = vpop.permute.xlu0 %1797
    %1799 = vset.pattern.permute.xlu0 0
    %1800 = vperm.xlu0 %1799, %v1719
    %v1801 = vpop.permute.xlu0 %1800
    %1802 = vset.pattern.permute.xlu0 0
    %1803 = vperm.xlu0 %1802, %v1720
    %v1804 = vpop.permute.xlu0 %1803
    %1805 = vset.pattern.permute.xlu0 0
    %1806 = vperm.xlu0 %1805, %v1721
    %v1807 = vpop.permute.xlu0 %1806
    %1808 = vset.pattern.permute.xlu0 0
    %1809 = vperm.xlu0 %1808, %v1722
    %v1810 = vpop.permute.xlu0 %1809
    %1811 = vset.pattern.permute.xlu0 0
    %1812 = vperm.xlu0 %1811, %v1723
    %v1813 = vpop.permute.xlu0 %1812
    %1814 = vset.pattern.permute.xlu0 0
    %1815 = vperm.xlu0 %1814, %v1724
    %v1816 = vpop.permute.xlu0 %1815
    %1817 = vset.pattern.permute.xlu0 0
    %1818 = vperm.xlu0 %1817, %v1725
    %v1819 = vpop.permute.xlu0 %1818
    %1820 = vset.pattern.permute.xlu0 0
    %1821 = vperm.xlu0 %1820, %v1726
    %v1822 = vpop.permute.xlu0 %1821
    %1823 = vset.pattern.permute.xlu0 0
    %1824 = vperm.xlu0 %1823, %v1727
    %v1825 = vpop.permute.xlu0 %1824
    %1826 = vset.pattern.permute.xlu0 0
    %1827 = vperm.xlu0 %1826, %v1728
    %v1828 = vpop.permute.xlu0 %1827
    %1829 = vset.pattern.permute.xlu0 0
    %1830 = vperm.xlu0 %1829, %v1729
    %v1831 = vpop.permute.xlu0 %1830
    %1832 = vset.pattern.permute.xlu0 0
    %1833 = vperm.xlu0 %1832, %v1730
    %v1834 = vpop.permute.xlu0 %1833
    %1835 = vset.pattern.permute.xlu0 0
    %1836 = vperm.xlu0 %1835, %v1731
    %v1837 = vpop.permute.xlu0 %1836
    %1838 = vset.pattern.permute.xlu0 0
    %1839 = vperm.xlu0 %1838, %v1732
    %v1840 = vpop.permute.xlu0 %1839
    %1841 = vset.pattern.permute.xlu0 0
    %1842 = vperm.xlu0 %1841, %v1733
    %v1843 = vpop.permute.xlu0 %1842
    %1844 = vset.pattern.permute.xlu0 0
    %1845 = vperm.xlu0 %1844, %v1734
    %v1846 = vpop.permute.xlu0 %1845
    %1847 = vset.pattern.permute.xlu0 0
    %1848 = vperm.xlu0 %1847, %v1735
    %v1849 = vpop.permute.xlu0 %1848
    %1850 = vset.pattern.permute.xlu0 0
    %1851 = vperm.xlu0 %1850, %v1736
    %v1852 = vpop.permute.xlu0 %1851
    %1853 = vset.pattern.permute.xlu0 0
    %1854 = vperm.xlu0 %1853, %v1737
    %v1855 = vpop.permute.xlu0 %1854
    %1856 = vset.pattern.permute.xlu0 0
    %1857 = vperm.xlu0 %1856, %v1738
    %v1858 = vpop.permute.xlu0 %1857
    %1859 = vset.pattern.permute.xlu0 0
    %1860 = vperm.xlu0 %1859, %v1739
    %v1861 = vpop.permute.xlu0 %1860
    %1862 = vset.pattern.permute.xlu0 0
    %1863 = vperm.xlu0 %1862, %v1740
    %v1864 = vpop.permute.xlu0 %1863
    %1865 = vset.pattern.permute.xlu0 0
    %1866 = vperm.xlu0 %1865, %v1741
    %v1867 = vpop.permute.xlu0 %1866
    %1868 = vset.pattern.permute.xlu0 0
    %1869 = vperm.xlu0 %1868, %v1742
    %v1870 = vpop.permute.xlu0 %1869
    %v1871 = vlaneseq
    %v1872 = vand.u32 %v1871, 127
    %v1873 = vlaneseq
    %v1874 = vshrl.u32 %v1873, 7
    %v1875 = vsub.s32 %v1872, %v1874
    %v1876 = vrot.slane %v1777, %v1875
    %v1877 = vadd.s32 %v1872, 4294967288
    %v1878 = vlaneseq
    %v1879 = vshrl.u32 %v1878, 7
    %v1880 = vsub.s32 %v1877, %v1879
    %v1881 = vrot.slane %v1780, %v1880
    %vm1882 = vcmask 130112
    %v1883 = vsel %vm1882, %v1881, %v1876
    %v1884 = vadd.s32 %v1872, 4294967280
    %v1885 = vlaneseq
    %v1886 = vshrl.u32 %v1885, 7
    %v1887 = vsub.s32 %v1884, %v1886
    %v1888 = vrot.slane %v1783, %v1887
    %vm1889 = vcmask 195712
    %v1890 = vsel %vm1889, %v1888, %v1883
    %v1891 = vadd.s32 %v1872, 4294967272
    %v1892 = vlaneseq
    %v1893 = vshrl.u32 %v1892, 7
    %v1894 = vsub.s32 %v1891, %v1893
    %v1895 = vrot.slane %v1786, %v1894
    %vm1896 = vcmask 261312
    %v1897 = vsel %vm1896, %v1895, %v1890
    %v1898 = vlaneseq
    %v1899 = vshrl.u32 %v1898, 7
    %v1900 = vsub.s32 %v1872, %v1899
    %v1901 = vrot.slane %v1789, %v1900
    %v1902 = vlaneseq
    %v1903 = vshrl.u32 %v1902, 7
    %v1904 = vsub.s32 %v1877, %v1903
    %v1905 = vrot.slane %v1792, %v1904
    %v1906 = vsel %vm1882, %v1905, %v1901
    %v1907 = vlaneseq
    %v1908 = vshrl.u32 %v1907, 7
    %v1909 = vsub.s32 %v1884, %v1908
    %v1910 = vrot.slane %v1795, %v1909
    %v1911 = vsel %vm1889, %v1910, %v1906
    %v1912 = vlaneseq
    %v1913 = vshrl.u32 %v1912, 7
    %v1914 = vsub.s32 %v1891, %v1913
    %v1915 = vrot.slane %v1798, %v1914
    %v1916 = vsel %vm1896, %v1915, %v1911
    %v1917 = vlaneseq
    %v1918 = vshrl.u32 %v1917, 7
    %v1919 = vsub.s32 %v1872, %v1918
    %v1920 = vrot.slane %v1801, %v1919
    %v1921 = vlaneseq
    %v1922 = vshrl.u32 %v1921, 7
    %v1923 = vsub.s32 %v1877, %v1922
    %v1924 = vrot.slane %v1804, %v1923
    %v1925 = vsel %vm1882, %v1924, %v1920
    %v1926 = vlaneseq
    %v1927 = vshrl.u32 %v1926, 7
    %v1928 = vsub.s32 %v1884, %v1927
    %v1929 = vrot.slane %v1807, %v1928
    %v1930 = vsel %vm1889, %v1929, %v1925
    %v1931 = vlaneseq
    %v1932 = vshrl.u32 %v1931, 7
    %v1933 = vsub.s32 %v1891, %v1932
    %v1934 = vrot.slane %v1810, %v1933
    %v1935 = vsel %vm1896, %v1934, %v1930
    %v1936 = vlaneseq
    %v1937 = vshrl.u32 %v1936, 7
    %v1938 = vsub.s32 %v1872, %v1937
    %v1939 = vrot.slane %v1813, %v1938
    %v1940 = vlaneseq
    %v1941 = vshrl.u32 %v1940, 7
    %v1942 = vsub.s32 %v1877, %v1941
    %v1943 = vrot.slane %v1816, %v1942
    %v1944 = vsel %vm1882, %v1943, %v1939
    %v1945 = vlaneseq
    %v1946 = vshrl.u32 %v1945, 7
    %v1947 = vsub.s32 %v1884, %v1946
    %v1948 = vrot.slane %v1819, %v1947
    %v1949 = vsel %vm1889, %v1948, %v1944
    %v1950 = vlaneseq
    %v1951 = vshrl.u32 %v1950, 7
    %v1952 = vsub.s32 %v1891, %v1951
    %v1953 = vrot.slane %v1822, %v1952
    %v1954 = vsel %vm1896, %v1953, %v1949
    %v1955 = vlaneseq
    %v1956 = vshrl.u32 %v1955, 7
    %v1957 = vsub.s32 %v1872, %v1956
    %v1958 = vrot.slane %v1825, %v1957
    %v1959 = vlaneseq
    %v1960 = vshrl.u32 %v1959, 7
    %v1961 = vsub.s32 %v1877, %v1960
    %v1962 = vrot.slane %v1828, %v1961
    %v1963 = vsel %vm1882, %v1962, %v1958
    %v1964 = vlaneseq
    %v1965 = vshrl.u32 %v1964, 7
    %v1966 = vsub.s32 %v1884, %v1965
    %v1967 = vrot.slane %v1831, %v1966
    %v1968 = vsel %vm1889, %v1967, %v1963
    %v1969 = vlaneseq
    %v1970 = vshrl.u32 %v1969, 7
    %v1971 = vsub.s32 %v1891, %v1970
    %v1972 = vrot.slane %v1834, %v1971
    %v1973 = vsel %vm1896, %v1972, %v1968
    %v1974 = vlaneseq
    %v1975 = vshrl.u32 %v1974, 7
    %v1976 = vsub.s32 %v1872, %v1975
    %v1977 = vrot.slane %v1837, %v1976
    %v1978 = vlaneseq
    %v1979 = vshrl.u32 %v1978, 7
    %v1980 = vsub.s32 %v1877, %v1979
    %v1981 = vrot.slane %v1840, %v1980
    %v1982 = vsel %vm1882, %v1981, %v1977
    %v1983 = vlaneseq
    %v1984 = vshrl.u32 %v1983, 7
    %v1985 = vsub.s32 %v1884, %v1984
    %v1986 = vrot.slane %v1843, %v1985
    %v1987 = vsel %vm1889, %v1986, %v1982
    %v1988 = vlaneseq
    %v1989 = vshrl.u32 %v1988, 7
    %v1990 = vsub.s32 %v1891, %v1989
    %v1991 = vrot.slane %v1846, %v1990
    %v1992 = vsel %vm1896, %v1991, %v1987
    %v1993 = vlaneseq
    %v1994 = vshrl.u32 %v1993, 7
    %v1995 = vsub.s32 %v1872, %v1994
    %v1996 = vrot.slane %v1849, %v1995
    %v1997 = vlaneseq
    %v1998 = vshrl.u32 %v1997, 7
    %v1999 = vsub.s32 %v1877, %v1998
    %v2000 = vrot.slane %v1852, %v1999
    %v2001 = vsel %vm1882, %v2000, %v1996
    %v2002 = vlaneseq
    %v2003 = vshrl.u32 %v2002, 7
    %v2004 = vsub.s32 %v1884, %v2003
    %v2005 = vrot.slane %v1855, %v2004
    %v2006 = vsel %vm1889, %v2005, %v2001
    %v2007 = vlaneseq
    %v2008 = vshrl.u32 %v2007, 7
    %v2009 = vsub.s32 %v1891, %v2008
    %v2010 = vrot.slane %v1858, %v2009
    %v2011 = vsel %vm1896, %v2010, %v2006
    %v2012 = vlaneseq
    %v2013 = vshrl.u32 %v2012, 7
    %v2014 = vsub.s32 %v1872, %v2013
    %v2015 = vrot.slane %v1861, %v2014
    %v2016 = vlaneseq
    %v2017 = vshrl.u32 %v2016, 7
    %v2018 = vsub.s32 %v1877, %v2017
    %v2019 = vrot.slane %v1864, %v2018
    %v2020 = vsel %vm1882, %v2019, %v2015
    %v2021 = vlaneseq
    %v2022 = vshrl.u32 %v2021, 7
    %v2023 = vsub.s32 %v1884, %v2022
    %v2024 = vrot.slane %v1867, %v2023
    %v2025 = vsel %vm1889, %v2024, %v2020
    %v2026 = vlaneseq
    %v2027 = vshrl.u32 %v2026, 7
    %v2028 = vsub.s32 %v1891, %v2027
    %v2029 = vrot.slane %v1870, %v2028
    %v2030 = vsel %vm1896, %v2029, %v2025
    %vm2031 = vcmask 1041409
    %v2032 = vsel %vm2031, %v1916, %v1897
    %vm2033 = vcmask 1042434
    %v2034 = vsel %vm2033, %v1935, %v2032
    %vm2035 = vcmask 1043459
    %v2036 = vsel %vm2035, %v1954, %v2034
    %vm2037 = vcmask 1044484
    %v2038 = vsel %vm2037, %v1973, %v2036
    %vm2039 = vcmask 1045509
    %v2040 = vsel %vm2039, %v1992, %v2038
    %vm2041 = vcmask 1046534
    %v2042 = vsel %vm2041, %v2011, %v2040
    %vm2043 = vcmask 1047559
    %v2044 = vsel %vm2043, %v2030, %v2042
    %v2046 = vsel %vm33, %v2044, 0.0
    %2047 = vadd.xlane.f32.xlu0 %v2046
    %v2048 = vpop.xlane.xlu0 %2047
    %v2050 = vlaneseq
    %v2051 = vshrl.u32 %v2050, 7
    %v2052 = vsub.s32 %v1872, %v2051
    %v2053 = vrot.slane %v2048, %v2052
    %vm2055 = vcmask 57344
    %2056 = vst.msk [vmem:[#allocation2] sm:$0x1] %vm2055, %v2053
    // Predicated region
    $region22: #{tpu_custom_call.1} parent=1 // pred_check
      _
    $region23: #{tpu_custom_call.1} parent=1 // pred_check_branch
      %2058 = sbr.rel (0) target = $region25
    $region24: #{tpu_custom_call.1} parent=1 // pred_region
      %s2060 = ssub.s32 16, 16
      %2061 = vsyncadd [#allocation3], %s2060
      %s2063 = sshll.u32 [#allocation2], 4
      %s2064 = int_to_ptr.vmem [resolvable:$true] %s2063
      %2066 = dma.vmem_to_hbm [thread:$0]  %s2064, 16, %s5, [#allocation3]
    $region25: #{tpu_custom_call.1} parent=1 // pred_fallthru
      _
    // Predicated region
    $region26: #{tpu_custom_call.1} parent=1 // pred_check
      _
    $region27: #{tpu_custom_call.1} parent=1 // pred_check_branch
      %2068 = sbr.rel (0) target = $region29
    $region28: #{tpu_custom_call.1} parent=1 // pred_region
      %2069 = dma.done [#allocation3], 16
    $region29: #{tpu_custom_call.1} parent=1 // pred_fallthru
      _
    %2070 = vsyncpa [#allocation3], 1

</llo_original>
